<compile_context>
chip_gen: v7x
topology: tpu7x:2x2x1
jax: 0.10.0
libtpu: 0.0.40
codegen_flags: <defaults>
</compile_context>

<pallas_src>
import functools

import jax
import jax.numpy as jnp
from jax.experimental import pallas as pl
from jax.experimental.pallas import tpu as pltpu

NEG_SLOPE = 0.01   # nn.LeakyReLU() default
LN_EPS = 1e-5      # nn.LayerNorm default
MASK_BIAS = -1e30  # finite additive mask (avoids exp(-inf - -inf) NaN hazard)


def _layernorm(x, w, b):
    mu = jnp.mean(x, axis=-1, keepdims=True)
    var = jnp.mean((x - mu) ** 2, axis=-1, keepdims=True)
    return (x - mu) * jax.lax.rsqrt(var + LN_EPS) * w + b


def _sab_kernel(x_ref, vec_ref, bqkv_ref, wqkv_ref, wo_ref, w12_ref,
                y_ref, aw_ref, *, num_heads):
    x = x_ref[...]                       # (L, H) — one batch element per grid step
    L, H = x.shape
    dh = H // num_heads
    scale = 1.0 / (dh ** 0.5)

    vec = vec_ref[...]                   # (8, H) packed small vectors
    ln1_w, ln1_b = vec[0:1], vec[1:2]
    bo = vec[2:3]
    ln2_w, ln2_b = vec[3:4], vec[4:5]
    b1, b2 = vec[5:6], vec[6:7]

    # ---- LayerNorm 1 ----
    z = _layernorm(x, ln1_w, ln1_b)

    # ---- fused QKV projection: one (L,H)@(H,3H) MXU pass, lane-dense weights ----
    qkv = jnp.dot(z, wqkv_ref[...],
                  preferred_element_type=jnp.float32) + bqkv_ref[...]   # (L, 3H)

    # heads split: static lane slices stacked onto a leading head axis (data movement
    # only — everything below is a leading-batch einsum over heads).
    def heads_of(base):
        return jnp.stack(
            [qkv[:, base + h * dh: base + (h + 1) * dh] for h in range(num_heads)],
            axis=0)                                                      # (heads, L, dh)

    q = heads_of(0)
    k = heads_of(H)
    v = heads_of(2 * H)

    # ---- single shared (L, L) causal additive mask ----
    r = jax.lax.broadcasted_iota(jnp.int32, (L, L), 0)
    c = jax.lax.broadcasted_iota(jnp.int32, (L, L), 1)
    bias = jnp.where(c <= r, 0.0, MASK_BIAS)

    # ---- batched scaled dot-product attention over heads ----
    s = jnp.einsum('hqd,hkd->hqk', q, k,
                   preferred_element_type=jnp.float32) * scale + bias    # (heads, L, L)
    m = jnp.max(s, axis=-1, keepdims=True)
    p = jnp.exp(s - m)
    denom = jnp.sum(p, axis=-1, keepdims=True)
    inv = pl.reciprocal(denom, approx=True)          # EUP slot
    inv = inv * (2.0 - denom * inv)                  # one Newton step -> ~f32 exact
    p = p * inv                                      # softmax probabilities

    o = jnp.einsum('hqk,hkd->hqd', p, v,
                   preferred_element_type=jnp.float32)                   # (heads, L, dh)

    # ---- output projection: concat heads along lanes, single (L,H)@(H,H) matmul ----
    o_cat = jnp.concatenate([o[h] for h in range(num_heads)], axis=-1)   # (L, H)
    attn = jnp.dot(o_cat, wo_ref[...],
                   preferred_element_type=jnp.float32) + bo              # (L, H)

    # attention weights averaged over heads (PyTorch default average_attn_weights=True)
    aw_ref[...] = jnp.sum(p, axis=0) * (1.0 / num_heads)                 # (L, L)

    # ---- residual 1, LayerNorm 2, MLP (fc1 -> LeakyReLU -> fc2), residual 2 ----
    zr = x + attn
    yn = _layernorm(zr, ln2_w, ln2_b)
    h1 = jnp.dot(yn, w12_ref[0], preferred_element_type=jnp.float32) + b1
    h1 = jnp.where(h1 >= 0, h1, NEG_SLOPE * h1)
    h2 = jnp.dot(h1, w12_ref[1], preferred_element_type=jnp.float32) + b2
    y_ref[...] = h2 + zr


def prepare_params(p):
    """One-time packing of the module parameters into lane-dense kernel operands.

    Call once (outside the forward path); the returned pytree is what the
    per-call wrapper feeds straight into pallas_call (no per-call repacking).
    """
    H = p["wq_t"].shape[0]
    vec = jnp.concatenate([
        p["ln1_w"], p["ln1_b"], p["bo"], p["ln2_w"], p["ln2_b"],
        p["b1"], p["b2"], jnp.zeros((1, H), jnp.float32),   # pad to 8 sublanes
    ], axis=0)                                               # (8, H)
    wqkv = jnp.concatenate([p["wq_t"], p["wk_t"], p["wv_t"]], axis=1)   # (H, 3H)
    bqkv = jnp.concatenate([p["bq"], p["bk"], p["bv"]], axis=1)         # (1, 3H)
    w12 = jnp.stack([p["w1_t"], p["w2_t"]], axis=0)                     # (2, H, H)
    return {"vec": vec, "bqkv": bqkv, "wqkv": wqkv, "wo": p["wo_t"], "w12": w12}


def self_attention_block(x, packed, num_heads):
    """x: (B, L, H) float32. Returns (y (B,L,H), attn_weights (B,L,L))."""
    B, L, H = x.shape

    kernel = functools.partial(_sab_kernel, num_heads=num_heads)

    in_specs = [
        pl.BlockSpec((None, L, H), lambda b: (b, 0, 0)),     # x: one batch per step
        pl.BlockSpec((8, H), lambda b: (0, 0)),              # packed LN/bias vectors
        pl.BlockSpec((1, 3 * H), lambda b: (0, 0)),          # qkv bias (lane-dense)
        pl.BlockSpec((H, 3 * H), lambda b: (0, 0)),          # fused Wqkv (lane-dense)
        pl.BlockSpec((H, H), lambda b: (0, 0)),              # Wo
        pl.BlockSpec((2, H, H), lambda b: (0, 0, 0)),        # fc1/fc2 weights
    ]
    out_specs = [
        pl.BlockSpec((None, L, H), lambda b: (b, 0, 0)),     # y
        pl.BlockSpec((None, L, L), lambda b: (b, 0, 0)),     # attn weights (B, L, L)
    ]
    out_shape = (
        jax.ShapeDtypeStruct((B, L, H), jnp.float32),
        jax.ShapeDtypeStruct((B, L, L), jnp.float32),
    )

    fn = pl.pallas_call(
        kernel,
        out_shape=out_shape,
        grid_spec=pltpu.PrefetchScalarGridSpec(
            num_scalar_prefetch=0,
            grid=(B,),                                       # parallel over batch
            in_specs=in_specs,
            out_specs=out_specs,
        ),
        compiler_params=pltpu.CompilerParams(
            dimension_semantics=("parallel",),
            vmem_limit_bytes=32 * 1024 * 1024,
        ),
    )
    y, attn_w = fn(x, packed["vec"], packed["bqkv"], packed["wqkv"],
                   packed["wo"], packed["w12"])
    return y, attn_w


def make_params(key, hidden_dim):
    """Deterministic synthetic parameters matching the PyTorch module's shapes."""
    H = hidden_dim
    ks = jax.random.split(key, 12)
    s = 0.05
    # nn.MultiheadAttention in_proj_weight is (3H, H); split into q/k/v and transpose.
    in_proj_w = s * jax.random.normal(ks[0], (3 * H, H), jnp.float32)
    in_proj_b = s * jax.random.normal(ks[1], (3 * H,), jnp.float32)
    out_proj_w = s * jax.random.normal(ks[2], (H, H), jnp.float32)
    out_proj_b = s * jax.random.normal(ks[3], (H,), jnp.float32)
    fc1_w = s * jax.random.normal(ks[4], (H, H), jnp.float32)
    fc1_b = s * jax.random.normal(ks[5], (H,), jnp.float32)
    fc2_w = s * jax.random.normal(ks[6], (H, H), jnp.float32)
    fc2_b = s * jax.random.normal(ks[7], (H,), jnp.float32)
    return {
        "ln1_w": 1.0 + 0.1 * jax.random.normal(ks[8], (1, H), jnp.float32),
        "ln1_b": 0.1 * jax.random.normal(ks[9], (1, H), jnp.float32),
        "wq_t": in_proj_w[0 * H:1 * H].T,
        "wk_t": in_proj_w[1 * H:2 * H].T,
        "wv_t": in_proj_w[2 * H:3 * H].T,
        "bq": in_proj_b[0 * H:1 * H].reshape(1, H),
        "bk": in_proj_b[1 * H:2 * H].reshape(1, H),
        "bv": in_proj_b[2 * H:3 * H].reshape(1, H),
        "wo_t": out_proj_w.T,
        "bo": out_proj_b.reshape(1, H),
        "ln2_w": 1.0 + 0.1 * jax.random.normal(ks[10], (1, H), jnp.float32),
        "ln2_b": 0.1 * jax.random.normal(ks[11], (1, H), jnp.float32),
        "w1_t": fc1_w.T,
        "b1": fc1_b.reshape(1, H),
        "w2_t": fc2_w.T,
        "b2": fc2_b.reshape(1, H),
    }


def _reference(x, p, num_heads):
    """Pure-JAX reference mirroring the PyTorch forward, for a sanity check."""
    def ln(v, w, b):
        mu = jnp.mean(v, -1, keepdims=True)
        var = jnp.mean((v - mu) ** 2, -1, keepdims=True)
        return (v - mu) * jax.lax.rsqrt(var + LN_EPS) * w + b

    B, L, H = x.shape
    dh = H // num_heads
    z = ln(x, p["ln1_w"], p["ln1_b"])
    q = z @ p["wq_t"] + p["bq"]
    k = z @ p["wk_t"] + p["bk"]
    v = z @ p["wv_t"] + p["bv"]
    qr = q.reshape(B, L, num_heads, dh).transpose(0, 2, 1, 3)
    kr = k.reshape(B, L, num_heads, dh).transpose(0, 2, 1, 3)
    vr = v.reshape(B, L, num_heads, dh).transpose(0, 2, 1, 3)
    s = jnp.einsum("bhqd,bhkd->bhqk", qr, kr) / (dh ** 0.5)
    mask = jnp.triu(jnp.ones((L, L), bool), k=1)
    s = jnp.where(mask, -jnp.inf, s)
    pw = jax.nn.softmax(s, axis=-1)
    o = jnp.einsum("bhqk,bhkd->bhqd", pw, vr).transpose(0, 2, 1, 3).reshape(B, L, H)
    attn = o @ p["wo_t"] + p["bo"]
    zr = x + attn
    y = ln(zr, p["ln2_w"], p["ln2_b"])
    h1 = y @ p["w1_t"] + p["b1"]
    h1 = jnp.where(h1 >= 0, h1, NEG_SLOPE * h1)
    y = h1 @ p["w2_t"] + p["b2"] + zr
    return y, jnp.mean(pw, axis=1)


if __name__ == "__main__":
    B, L, H, NUM_HEADS = 2, 8, 32, 8   # hidden_dim=32, input_length=8, num_heads=8

    key = jax.random.PRNGKey(0)
    kx, kp = jax.random.split(key)
    x = jax.random.normal(kx, (B, L, H), jnp.float32)
    params = make_params(kp, H)

    # One-time packing (hoisted out of the forward path).
    packed = jax.tree_util.tree_map(jax.block_until_ready, prepare_params(params))

    y, attn_w = self_attention_block(x, packed, NUM_HEADS)
    jax.block_until_ready((y, attn_w))

    y_expect, aw_expect = _reference(x, params, NUM_HEADS)
    assert y.shape == (B, L, H) and attn_w.shape == (B, L, L)
    assert jnp.allclose(y, y_expect, rtol=1e-3, atol=1e-3), \
        float(jnp.max(jnp.abs(y - y_expect)))
    assert jnp.allclose(attn_w, aw_expect, rtol=1e-3, atol=1e-3), \
        float(jnp.max(jnp.abs(attn_w - aw_expect)))

    print("KERNEL_OK")
</pallas_src>

<mosaic_0001>
module attributes {stable_mosaic.version = 11 : i64} {
  func.func @_sab_kernel(%arg0: i32, %arg1: memref<1x8x32xf32, #tpu.memory_space<vmem>>, %arg2: memref<8x32xf32, #tpu.memory_space<vmem>>, %arg3: memref<1x96xf32, #tpu.memory_space<vmem>>, %arg4: memref<32x96xf32, #tpu.memory_space<vmem>>, %arg5: memref<32x32xf32, #tpu.memory_space<vmem>>, %arg6: memref<2x32x32xf32, #tpu.memory_space<vmem>>, %arg7: memref<1x8x32xf32, #tpu.memory_space<vmem>>, %arg8: memref<1x8x8xf32, #tpu.memory_space<vmem>>) attributes {dimension_semantics = [#tpu.dimension_semantics<parallel>], iteration_bounds = array<i64: 2>, scalar_prefetch = 0 : i64, scratch_operands = 0 : i64, tpu.core_type = #tpu.core_type<tc>, window_params = [{transform_indices = @transform_0, window_bounds = array<i64: 1, 8, 32>}, {pipeline_mode = #tpu.pipeline_mode<synchronous>, transform_indices = @transform_1, window_bounds = array<i64: 8, 32>}, {pipeline_mode = #tpu.pipeline_mode<synchronous>, transform_indices = @transform_2, window_bounds = array<i64: 1, 96>}, {pipeline_mode = #tpu.pipeline_mode<synchronous>, transform_indices = @transform_3, window_bounds = array<i64: 32, 96>}, {pipeline_mode = #tpu.pipeline_mode<synchronous>, transform_indices = @transform_4, window_bounds = array<i64: 32, 32>}, {pipeline_mode = #tpu.pipeline_mode<synchronous>, transform_indices = @transform_5, window_bounds = array<i64: 2, 32, 32>}, {transform_indices = @transform_6, window_bounds = array<i64: 1, 8, 32>}, {transform_indices = @transform_7, window_bounds = array<i64: 1, 8, 8>}]} {
    %c0 = arith.constant 0 : index
    %c0_0 = arith.constant 0 : index
    %c0_1 = arith.constant 0 : index
    %0 = vector.load %arg1[%c0, %c0_0, %c0_1] : memref<1x8x32xf32, #tpu.memory_space<vmem>>, vector<1x8x32xf32>
    %1 = vector.shape_cast %0 : vector<1x8x32xf32> to vector<8x32xf32>
    %c0_2 = arith.constant 0 : index
    %c0_3 = arith.constant 0 : index
    %2 = vector.load %arg2[%c0_2, %c0_3] : memref<8x32xf32, #tpu.memory_space<vmem>>, vector<8x32xf32>
    %3 = vector.extract_strided_slice %2 {offsets = [0, 0], sizes = [1, 32], strides = [1, 1]} : vector<8x32xf32> to vector<1x32xf32>
    %4 = vector.extract_strided_slice %2 {offsets = [1, 0], sizes = [1, 32], strides = [1, 1]} : vector<8x32xf32> to vector<1x32xf32>
    %5 = vector.extract_strided_slice %2 {offsets = [2, 0], sizes = [1, 32], strides = [1, 1]} : vector<8x32xf32> to vector<1x32xf32>
    %6 = vector.extract_strided_slice %2 {offsets = [3, 0], sizes = [1, 32], strides = [1, 1]} : vector<8x32xf32> to vector<1x32xf32>
    %7 = vector.extract_strided_slice %2 {offsets = [4, 0], sizes = [1, 32], strides = [1, 1]} : vector<8x32xf32> to vector<1x32xf32>
    %8 = vector.extract_strided_slice %2 {offsets = [5, 0], sizes = [1, 32], strides = [1, 1]} : vector<8x32xf32> to vector<1x32xf32>
    %9 = vector.extract_strided_slice %2 {offsets = [6, 0], sizes = [1, 32], strides = [1, 1]} : vector<8x32xf32> to vector<1x32xf32>
    %cst = arith.constant dense<0.000000e+00> : vector<8xf32>
    %10 = vector.multi_reduction <add>, %1, %cst [1] : vector<8x32xf32> to vector<8xf32>
    %11 = vector.shape_cast %10 : vector<8xf32> to vector<8x1xf32>
    %cst_4 = arith.constant 3.200000e+01 : f32
    %12 = vector.broadcast %cst_4 : f32 to vector<8x1xf32>
    %13 = arith.divf %11, %12 : vector<8x1xf32>
    %14 = vector.broadcast %13 : vector<8x1xf32> to vector<8x32xf32>
    %15 = arith.subf %1, %14 : vector<8x32xf32>
    %16 = arith.mulf %15, %15 : vector<8x32xf32>
    %cst_5 = arith.constant dense<0.000000e+00> : vector<8xf32>
    %17 = vector.multi_reduction <add>, %16, %cst_5 [1] : vector<8x32xf32> to vector<8xf32>
    %18 = vector.shape_cast %17 : vector<8xf32> to vector<8x1xf32>
    %cst_6 = arith.constant 3.200000e+01 : f32
    %19 = vector.broadcast %cst_6 : f32 to vector<8x1xf32>
    %20 = arith.divf %18, %19 : vector<8x1xf32>
    %21 = vector.broadcast %13 : vector<8x1xf32> to vector<8x32xf32>
    %22 = arith.subf %1, %21 : vector<8x32xf32>
    %cst_7 = arith.constant 9.99999974E-6 : f32
    %23 = vector.broadcast %cst_7 : f32 to vector<8x1xf32>
    %24 = arith.addf %20, %23 : vector<8x1xf32>
    %25 = math.rsqrt %24 : vector<8x1xf32>
    %26 = vector.broadcast %25 : vector<8x1xf32> to vector<8x32xf32>
    %27 = arith.mulf %22, %26 : vector<8x32xf32>
    %28 = vector.broadcast %3 : vector<1x32xf32> to vector<8x32xf32>
    %29 = arith.mulf %27, %28 : vector<8x32xf32>
    %30 = vector.broadcast %4 : vector<1x32xf32> to vector<8x32xf32>
    %31 = arith.addf %29, %30 : vector<8x32xf32>
    %c0_8 = arith.constant 0 : index
    %c0_9 = arith.constant 0 : index
    %32 = vector.load %arg4[%c0_8, %c0_9] : memref<32x96xf32, #tpu.memory_space<vmem>>, vector<32x96xf32>
    %cst_10 = arith.constant dense<0.000000e+00> : vector<8x96xf32>
    %33 = tpu.matmul %31, %32, %cst_10 {dimension_numbers = #tpu.dot_dimension_numbers<[1], [0], [0], [1], [0, 0, 1, 1], [], []>} : vector<8x32xf32>, vector<32x96xf32>, vector<8x96xf32> -> vector<8x96xf32>
    %c0_11 = arith.constant 0 : index
    %c0_12 = arith.constant 0 : index
    %34 = vector.load %arg3[%c0_11, %c0_12] : memref<1x96xf32, #tpu.memory_space<vmem>>, vector<1x96xf32>
    %35 = vector.broadcast %34 : vector<1x96xf32> to vector<8x96xf32>
    %36 = arith.addf %33, %35 : vector<8x96xf32>
    %37 = vector.extract_strided_slice %36 {offsets = [0, 0], sizes = [8, 4], strides = [1, 1]} : vector<8x96xf32> to vector<8x4xf32>
    %38 = vector.extract_strided_slice %36 {offsets = [0, 4], sizes = [8, 4], strides = [1, 1]} : vector<8x96xf32> to vector<8x4xf32>
    %39 = vector.extract_strided_slice %36 {offsets = [0, 8], sizes = [8, 4], strides = [1, 1]} : vector<8x96xf32> to vector<8x4xf32>
    %40 = vector.extract_strided_slice %36 {offsets = [0, 12], sizes = [8, 4], strides = [1, 1]} : vector<8x96xf32> to vector<8x4xf32>
    %41 = vector.extract_strided_slice %36 {offsets = [0, 16], sizes = [8, 4], strides = [1, 1]} : vector<8x96xf32> to vector<8x4xf32>
    %42 = vector.extract_strided_slice %36 {offsets = [0, 20], sizes = [8, 4], strides = [1, 1]} : vector<8x96xf32> to vector<8x4xf32>
    %43 = vector.extract_strided_slice %36 {offsets = [0, 24], sizes = [8, 4], strides = [1, 1]} : vector<8x96xf32> to vector<8x4xf32>
    %44 = vector.extract_strided_slice %36 {offsets = [0, 28], sizes = [8, 4], strides = [1, 1]} : vector<8x96xf32> to vector<8x4xf32>
    %45 = vector.shape_cast %37 : vector<8x4xf32> to vector<1x8x4xf32>
    %46 = vector.shape_cast %38 : vector<8x4xf32> to vector<1x8x4xf32>
    %47 = vector.shape_cast %39 : vector<8x4xf32> to vector<1x8x4xf32>
    %48 = vector.shape_cast %40 : vector<8x4xf32> to vector<1x8x4xf32>
    %49 = vector.shape_cast %41 : vector<8x4xf32> to vector<1x8x4xf32>
    %50 = vector.shape_cast %42 : vector<8x4xf32> to vector<1x8x4xf32>
    %51 = vector.shape_cast %43 : vector<8x4xf32> to vector<1x8x4xf32>
    %52 = vector.shape_cast %44 : vector<8x4xf32> to vector<1x8x4xf32>
    %53 = tpu.concatenate %45, %46, %47, %48, %49, %50, %51, %52 in 0 : vector<1x8x4xf32>, vector<1x8x4xf32>, vector<1x8x4xf32>, vector<1x8x4xf32>, vector<1x8x4xf32>, vector<1x8x4xf32>, vector<1x8x4xf32>, vector<1x8x4xf32> -> vector<8x8x4xf32>
    %54 = vector.extract_strided_slice %36 {offsets = [0, 32], sizes = [8, 4], strides = [1, 1]} : vector<8x96xf32> to vector<8x4xf32>
    %55 = vector.extract_strided_slice %36 {offsets = [0, 36], sizes = [8, 4], strides = [1, 1]} : vector<8x96xf32> to vector<8x4xf32>
    %56 = vector.extract_strided_slice %36 {offsets = [0, 40], sizes = [8, 4], strides = [1, 1]} : vector<8x96xf32> to vector<8x4xf32>
    %57 = vector.extract_strided_slice %36 {offsets = [0, 44], sizes = [8, 4], strides = [1, 1]} : vector<8x96xf32> to vector<8x4xf32>
    %58 = vector.extract_strided_slice %36 {offsets = [0, 48], sizes = [8, 4], strides = [1, 1]} : vector<8x96xf32> to vector<8x4xf32>
    %59 = vector.extract_strided_slice %36 {offsets = [0, 52], sizes = [8, 4], strides = [1, 1]} : vector<8x96xf32> to vector<8x4xf32>
    %60 = vector.extract_strided_slice %36 {offsets = [0, 56], sizes = [8, 4], strides = [1, 1]} : vector<8x96xf32> to vector<8x4xf32>
    %61 = vector.extract_strided_slice %36 {offsets = [0, 60], sizes = [8, 4], strides = [1, 1]} : vector<8x96xf32> to vector<8x4xf32>
    %62 = vector.shape_cast %54 : vector<8x4xf32> to vector<1x8x4xf32>
    %63 = vector.shape_cast %55 : vector<8x4xf32> to vector<1x8x4xf32>
    %64 = vector.shape_cast %56 : vector<8x4xf32> to vector<1x8x4xf32>
    %65 = vector.shape_cast %57 : vector<8x4xf32> to vector<1x8x4xf32>
    %66 = vector.shape_cast %58 : vector<8x4xf32> to vector<1x8x4xf32>
    %67 = vector.shape_cast %59 : vector<8x4xf32> to vector<1x8x4xf32>
    %68 = vector.shape_cast %60 : vector<8x4xf32> to vector<1x8x4xf32>
    %69 = vector.shape_cast %61 : vector<8x4xf32> to vector<1x8x4xf32>
    %70 = tpu.concatenate %62, %63, %64, %65, %66, %67, %68, %69 in 0 : vector<1x8x4xf32>, vector<1x8x4xf32>, vector<1x8x4xf32>, vector<1x8x4xf32>, vector<1x8x4xf32>, vector<1x8x4xf32>, vector<1x8x4xf32>, vector<1x8x4xf32> -> vector<8x8x4xf32>
    %71 = vector.extract_strided_slice %36 {offsets = [0, 64], sizes = [8, 4], strides = [1, 1]} : vector<8x96xf32> to vector<8x4xf32>
    %72 = vector.extract_strided_slice %36 {offsets = [0, 68], sizes = [8, 4], strides = [1, 1]} : vector<8x96xf32> to vector<8x4xf32>
    %73 = vector.extract_strided_slice %36 {offsets = [0, 72], sizes = [8, 4], strides = [1, 1]} : vector<8x96xf32> to vector<8x4xf32>
    %74 = vector.extract_strided_slice %36 {offsets = [0, 76], sizes = [8, 4], strides = [1, 1]} : vector<8x96xf32> to vector<8x4xf32>
    %75 = vector.extract_strided_slice %36 {offsets = [0, 80], sizes = [8, 4], strides = [1, 1]} : vector<8x96xf32> to vector<8x4xf32>
    %76 = vector.extract_strided_slice %36 {offsets = [0, 84], sizes = [8, 4], strides = [1, 1]} : vector<8x96xf32> to vector<8x4xf32>
    %77 = vector.extract_strided_slice %36 {offsets = [0, 88], sizes = [8, 4], strides = [1, 1]} : vector<8x96xf32> to vector<8x4xf32>
    %78 = vector.extract_strided_slice %36 {offsets = [0, 92], sizes = [8, 4], strides = [1, 1]} : vector<8x96xf32> to vector<8x4xf32>
    %79 = vector.shape_cast %71 : vector<8x4xf32> to vector<1x8x4xf32>
    %80 = vector.shape_cast %72 : vector<8x4xf32> to vector<1x8x4xf32>
    %81 = vector.shape_cast %73 : vector<8x4xf32> to vector<1x8x4xf32>
    %82 = vector.shape_cast %74 : vector<8x4xf32> to vector<1x8x4xf32>
    %83 = vector.shape_cast %75 : vector<8x4xf32> to vector<1x8x4xf32>
    %84 = vector.shape_cast %76 : vector<8x4xf32> to vector<1x8x4xf32>
    %85 = vector.shape_cast %77 : vector<8x4xf32> to vector<1x8x4xf32>
    %86 = vector.shape_cast %78 : vector<8x4xf32> to vector<1x8x4xf32>
    %87 = tpu.concatenate %79, %80, %81, %82, %83, %84, %85, %86 in 0 : vector<1x8x4xf32>, vector<1x8x4xf32>, vector<1x8x4xf32>, vector<1x8x4xf32>, vector<1x8x4xf32>, vector<1x8x4xf32>, vector<1x8x4xf32>, vector<1x8x4xf32> -> vector<8x8x4xf32>
    %88 = tpu.iota {dimensions = array<i32: 0>} : vector<8x8xi32>
    %89 = tpu.iota {dimensions = array<i32: 1>} : vector<8x8xi32>
    %90 = arith.cmpi sle, %89, %88 : vector<8x8xi32>
    %cst_13 = arith.constant 0.000000e+00 : f32
    %cst_14 = arith.constant -1.000000e+30 : f32
    %91 = vector.broadcast %cst_13 : f32 to vector<8x8xf32>
    %92 = vector.broadcast %cst_14 : f32 to vector<8x8xf32>
    %93 = arith.select %90, %91, %92 : vector<8x8xi1>, vector<8x8xf32>
    "tpu.trace_start"() <{level = 10 : i32, message = "hqd,hkd->hqk"}> : () -> ()
    %cst_15 = arith.constant dense<0.000000e+00> : vector<8x8x8xf32>
    %94 = tpu.matmul %53, %70, %cst_15 {dimension_numbers = #tpu.dot_dimension_numbers<[2], [2], [1], [1], [0, 0, 0, 1, 1, 1], [0], [0]>} : vector<8x8x4xf32>, vector<8x8x4xf32>, vector<8x8x8xf32> -> vector<8x8x8xf32>
    "tpu.trace_stop"() : () -> ()
    %cst_16 = arith.constant 5.000000e-01 : f32
    %95 = vector.broadcast %cst_16 : f32 to vector<8x8x8xf32>
    %96 = arith.mulf %94, %95 : vector<8x8x8xf32>
    %97 = vector.shape_cast %93 : vector<8x8xf32> to vector<1x8x8xf32>
    %98 = vector.broadcast %97 : vector<1x8x8xf32> to vector<8x8x8xf32>
    %99 = arith.addf %96, %98 : vector<8x8x8xf32>
    %cst_17 = arith.constant dense<0xFF800000> : vector<8x8xf32>
    %100 = vector.multi_reduction <maximumf>, %99, %cst_17 [2] : vector<8x8x8xf32> to vector<8x8xf32>
    %101 = vector.shape_cast %100 : vector<8x8xf32> to vector<8x8x1xf32>
    %102 = vector.broadcast %101 : vector<8x8x1xf32> to vector<8x8x8xf32>
    %103 = arith.subf %99, %102 : vector<8x8x8xf32>
    %104 = math.exp %103 : vector<8x8x8xf32>
    %cst_18 = arith.constant dense<0.000000e+00> : vector<8x8xf32>
    %105 = vector.multi_reduction <add>, %104, %cst_18 [2] : vector<8x8x8xf32> to vector<8x8xf32>
    %106 = vector.shape_cast %105 : vector<8x8xf32> to vector<8x8x1xf32>
    %107 = tpu.reciprocal %106 {approx = true} : vector<8x8x1xf32> -> vector<8x8x1xf32>
    %108 = arith.mulf %106, %107 : vector<8x8x1xf32>
    %cst_19 = arith.constant 2.000000e+00 : f32
    %109 = vector.broadcast %cst_19 : f32 to vector<8x8x1xf32>
    %110 = arith.subf %109, %108 : vector<8x8x1xf32>
    %111 = arith.mulf %107, %110 : vector<8x8x1xf32>
    %112 = vector.broadcast %111 : vector<8x8x1xf32> to vector<8x8x8xf32>
    %113 = arith.mulf %104, %112 : vector<8x8x8xf32>
    "tpu.trace_start"() <{level = 10 : i32, message = "hqk,hkd->hqd"}> : () -> ()
    %cst_20 = arith.constant dense<0.000000e+00> : vector<8x8x4xf32>
    %114 = tpu.matmul %113, %87, %cst_20 {dimension_numbers = #tpu.dot_dimension_numbers<[2], [1], [1], [2], [0, 0, 0, 1, 1, 2], [0], [0]>} : vector<8x8x8xf32>, vector<8x8x4xf32>, vector<8x8x4xf32> -> vector<8x8x4xf32>
    "tpu.trace_stop"() : () -> ()
    %115 = vector.extract_strided_slice %114 {offsets = [0, 0, 0], sizes = [1, 8, 4], strides = [1, 1, 1]} : vector<8x8x4xf32> to vector<1x8x4xf32>
    %116 = vector.shape_cast %115 : vector<1x8x4xf32> to vector<8x4xf32>
    %117 = vector.extract_strided_slice %114 {offsets = [1, 0, 0], sizes = [1, 8, 4], strides = [1, 1, 1]} : vector<8x8x4xf32> to vector<1x8x4xf32>
    %118 = vector.shape_cast %117 : vector<1x8x4xf32> to vector<8x4xf32>
    %119 = vector.extract_strided_slice %114 {offsets = [2, 0, 0], sizes = [1, 8, 4], strides = [1, 1, 1]} : vector<8x8x4xf32> to vector<1x8x4xf32>
    %120 = vector.shape_cast %119 : vector<1x8x4xf32> to vector<8x4xf32>
    %121 = vector.extract_strided_slice %114 {offsets = [3, 0, 0], sizes = [1, 8, 4], strides = [1, 1, 1]} : vector<8x8x4xf32> to vector<1x8x4xf32>
    %122 = vector.shape_cast %121 : vector<1x8x4xf32> to vector<8x4xf32>
    %123 = vector.extract_strided_slice %114 {offsets = [4, 0, 0], sizes = [1, 8, 4], strides = [1, 1, 1]} : vector<8x8x4xf32> to vector<1x8x4xf32>
    %124 = vector.shape_cast %123 : vector<1x8x4xf32> to vector<8x4xf32>
    %125 = vector.extract_strided_slice %114 {offsets = [5, 0, 0], sizes = [1, 8, 4], strides = [1, 1, 1]} : vector<8x8x4xf32> to vector<1x8x4xf32>
    %126 = vector.shape_cast %125 : vector<1x8x4xf32> to vector<8x4xf32>
    %127 = vector.extract_strided_slice %114 {offsets = [6, 0, 0], sizes = [1, 8, 4], strides = [1, 1, 1]} : vector<8x8x4xf32> to vector<1x8x4xf32>
    %128 = vector.shape_cast %127 : vector<1x8x4xf32> to vector<8x4xf32>
    %129 = vector.extract_strided_slice %114 {offsets = [7, 0, 0], sizes = [1, 8, 4], strides = [1, 1, 1]} : vector<8x8x4xf32> to vector<1x8x4xf32>
    %130 = vector.shape_cast %129 : vector<1x8x4xf32> to vector<8x4xf32>
    %131 = tpu.concatenate %116, %118, %120, %122, %124, %126, %128, %130 in 1 : vector<8x4xf32>, vector<8x4xf32>, vector<8x4xf32>, vector<8x4xf32>, vector<8x4xf32>, vector<8x4xf32>, vector<8x4xf32>, vector<8x4xf32> -> vector<8x32xf32>
    %c0_21 = arith.constant 0 : index
    %c0_22 = arith.constant 0 : index
    %132 = vector.load %arg5[%c0_21, %c0_22] : memref<32x32xf32, #tpu.memory_space<vmem>>, vector<32x32xf32>
    %cst_23 = arith.constant dense<0.000000e+00> : vector<8x32xf32>
    %133 = tpu.matmul %131, %132, %cst_23 {dimension_numbers = #tpu.dot_dimension_numbers<[1], [0], [0], [1], [0, 0, 1, 1], [], []>} : vector<8x32xf32>, vector<32x32xf32>, vector<8x32xf32> -> vector<8x32xf32>
    %134 = vector.broadcast %5 : vector<1x32xf32> to vector<8x32xf32>
    %135 = arith.addf %133, %134 : vector<8x32xf32>
    %cst_24 = arith.constant dense<0.000000e+00> : vector<8x8xf32>
    %136 = vector.multi_reduction <add>, %113, %cst_24 [0] : vector<8x8x8xf32> to vector<8x8xf32>
    %cst_25 = arith.constant 1.250000e-01 : f32
    %137 = vector.broadcast %cst_25 : f32 to vector<8x8xf32>
    %138 = arith.mulf %136, %137 : vector<8x8xf32>
    %c0_26 = arith.constant 0 : index
    %c0_27 = arith.constant 0 : index
    %c0_28 = arith.constant 0 : index
    %139 = vector.load %arg8[%c0_26, %c0_27, %c0_28] : memref<1x8x8xf32, #tpu.memory_space<vmem>>, vector<1x8x8xf32>
    %140 = vector.shape_cast %139 : vector<1x8x8xf32> to vector<8x8xf32>
    %141 = vector.shape_cast %138 : vector<8x8xf32> to vector<1x8x8xf32>
    tpu.vector_store %arg8[%c0_26, %c0_27, %c0_28], %141 {strides = array<i32>} : memref<1x8x8xf32, #tpu.memory_space<vmem>>, vector<1x8x8xf32>,
    %142 = arith.addf %1, %135 : vector<8x32xf32>
    %cst_29 = arith.constant dense<0.000000e+00> : vector<8xf32>
    %143 = vector.multi_reduction <add>, %142, %cst_29 [1] : vector<8x32xf32> to vector<8xf32>
    %144 = vector.shape_cast %143 : vector<8xf32> to vector<8x1xf32>
    %cst_30 = arith.constant 3.200000e+01 : f32
    %145 = vector.broadcast %cst_30 : f32 to vector<8x1xf32>
    %146 = arith.divf %144, %145 : vector<8x1xf32>
    %147 = vector.broadcast %146 : vector<8x1xf32> to vector<8x32xf32>
    %148 = arith.subf %142, %147 : vector<8x32xf32>
    %149 = arith.mulf %148, %148 : vector<8x32xf32>
    %cst_31 = arith.constant dense<0.000000e+00> : vector<8xf32>
    %150 = vector.multi_reduction <add>, %149, %cst_31 [1] : vector<8x32xf32> to vector<8xf32>
    %151 = vector.shape_cast %150 : vector<8xf32> to vector<8x1xf32>
    %cst_32 = arith.constant 3.200000e+01 : f32
    %152 = vector.broadcast %cst_32 : f32 to vector<8x1xf32>
    %153 = arith.divf %151, %152 : vector<8x1xf32>
    %154 = vector.broadcast %146 : vector<8x1xf32> to vector<8x32xf32>
    %155 = arith.subf %142, %154 : vector<8x32xf32>
    %cst_33 = arith.constant 9.99999974E-6 : f32
    %156 = vector.broadcast %cst_33 : f32 to vector<8x1xf32>
    %157 = arith.addf %153, %156 : vector<8x1xf32>
    %158 = math.rsqrt %157 : vector<8x1xf32>
    %159 = vector.broadcast %158 : vector<8x1xf32> to vector<8x32xf32>
    %160 = arith.mulf %155, %159 : vector<8x32xf32>
    %161 = vector.broadcast %6 : vector<1x32xf32> to vector<8x32xf32>
    %162 = arith.mulf %160, %161 : vector<8x32xf32>
    %163 = vector.broadcast %7 : vector<1x32xf32> to vector<8x32xf32>
    %164 = arith.addf %162, %163 : vector<8x32xf32>
    %c0_34 = arith.constant 0 : index
    %c0_35 = arith.constant 0 : index
    %c0_36 = arith.constant 0 : index
    %165 = vector.load %arg6[%c0_34, %c0_35, %c0_36] : memref<2x32x32xf32, #tpu.memory_space<vmem>>, vector<1x32x32xf32>
    %166 = vector.shape_cast %165 : vector<1x32x32xf32> to vector<32x32xf32>
    %cst_37 = arith.constant dense<0.000000e+00> : vector<8x32xf32>
    %167 = tpu.matmul %164, %166, %cst_37 {dimension_numbers = #tpu.dot_dimension_numbers<[1], [0], [0], [1], [0, 0, 1, 1], [], []>} : vector<8x32xf32>, vector<32x32xf32>, vector<8x32xf32> -> vector<8x32xf32>
    %168 = vector.broadcast %8 : vector<1x32xf32> to vector<8x32xf32>
    %169 = arith.addf %167, %168 : vector<8x32xf32>
    %cst_38 = arith.constant 0.000000e+00 : f32
    %170 = vector.broadcast %cst_38 : f32 to vector<8x32xf32>
    %171 = arith.cmpf oge, %169, %170 : vector<8x32xf32>
    %cst_39 = arith.constant 0.00999999977 : f32
    %172 = vector.broadcast %cst_39 : f32 to vector<8x32xf32>
    %173 = arith.mulf %172, %169 : vector<8x32xf32>
    %174 = arith.select %171, %169, %173 : vector<8x32xi1>, vector<8x32xf32>
    %c1 = arith.constant 1 : index
    %c0_40 = arith.constant 0 : index
    %c0_41 = arith.constant 0 : index
    %175 = vector.load %arg6[%c1, %c0_40, %c0_41] : memref<2x32x32xf32, #tpu.memory_space<vmem>>, vector<1x32x32xf32>
    %176 = vector.shape_cast %175 : vector<1x32x32xf32> to vector<32x32xf32>
    %cst_42 = arith.constant dense<0.000000e+00> : vector<8x32xf32>
    %177 = tpu.matmul %174, %176, %cst_42 {dimension_numbers = #tpu.dot_dimension_numbers<[1], [0], [0], [1], [0, 0, 1, 1], [], []>} : vector<8x32xf32>, vector<32x32xf32>, vector<8x32xf32> -> vector<8x32xf32>
    %178 = vector.broadcast %9 : vector<1x32xf32> to vector<8x32xf32>
    %179 = arith.addf %177, %178 : vector<8x32xf32>
    %180 = arith.addf %179, %142 : vector<8x32xf32>
    %c0_43 = arith.constant 0 : index
    %c0_44 = arith.constant 0 : index
    %c0_45 = arith.constant 0 : index
    %181 = vector.load %arg7[%c0_43, %c0_44, %c0_45] : memref<1x8x32xf32, #tpu.memory_space<vmem>>, vector<1x8x32xf32>
    %182 = vector.shape_cast %181 : vector<1x8x32xf32> to vector<8x32xf32>
    %183 = vector.shape_cast %180 : vector<8x32xf32> to vector<1x8x32xf32>
    tpu.vector_store %arg7[%c0_43, %c0_44, %c0_45], %183 {strides = array<i32>} : memref<1x8x32xf32, #tpu.memory_space<vmem>>, vector<1x8x32xf32>,
    return
  }
  func.func @transform_0(%arg0: i32) -> (i32, i32, i32) {
    %c0_i32 = arith.constant 0 : i32
    %c0_i32_0 = arith.constant 0 : i32
    %c0_i32_1 = arith.constant 0 : i32
    return %arg0, %c0_i32, %c0_i32_0 : i32, i32, i32
  }
  func.func @transform_1(%arg0: i32) -> (i32, i32) {
    %c0_i32 = arith.constant 0 : i32
    %c0_i32_0 = arith.constant 0 : i32
    %c0_i32_1 = arith.constant 0 : i32
    return %c0_i32, %c0_i32_0 : i32, i32
  }
  func.func @transform_2(%arg0: i32) -> (i32, i32) {
    %c0_i32 = arith.constant 0 : i32
    %c0_i32_0 = arith.constant 0 : i32
    %c0_i32_1 = arith.constant 0 : i32
    return %c0_i32, %c0_i32_0 : i32, i32
  }
  func.func @transform_3(%arg0: i32) -> (i32, i32) {
    %c0_i32 = arith.constant 0 : i32
    %c0_i32_0 = arith.constant 0 : i32
    %c0_i32_1 = arith.constant 0 : i32
    return %c0_i32, %c0_i32_0 : i32, i32
  }
  func.func @transform_4(%arg0: i32) -> (i32, i32) {
    %c0_i32 = arith.constant 0 : i32
    %c0_i32_0 = arith.constant 0 : i32
    %c0_i32_1 = arith.constant 0 : i32
    return %c0_i32, %c0_i32_0 : i32, i32
  }
  func.func @transform_5(%arg0: i32) -> (i32, i32, i32) {
    %c0_i32 = arith.constant 0 : i32
    %c0_i32_0 = arith.constant 0 : i32
    %c0_i32_1 = arith.constant 0 : i32
    %c0_i32_2 = arith.constant 0 : i32
    return %c0_i32, %c0_i32_0, %c0_i32_1 : i32, i32, i32
  }
  func.func @transform_6(%arg0: i32) -> (i32, i32, i32) {
    %c0_i32 = arith.constant 0 : i32
    %c0_i32_0 = arith.constant 0 : i32
    %c0_i32_1 = arith.constant 0 : i32
    return %arg0, %c0_i32, %c0_i32_0 : i32, i32, i32
  }
  func.func @transform_7(%arg0: i32) -> (i32, i32, i32) {
    %c0_i32 = arith.constant 0 : i32
    %c0_i32_0 = arith.constant 0 : i32
    %c0_i32_1 = arith.constant 0 : i32
    return %arg0, %c0_i32, %c0_i32_0 : i32, i32, i32
  }
}

</mosaic_0001>

<llo_original>
// kernel: tpu_custom_call.1
$region0: #{tpu_custom_call.1}
  #allocation0 [shape = 'u32[]', space=smem, size = 0x4, offset = 0x4, fixed_abs, tag = 'smem constant byte address 0x4 - core index']
  #allocation1 [shape = 'u32[144,128]{1,0:T(1,128)}', space=vmem, size = 0x12000, scoped, tag = 'internal scratch']
  %s0 = inlined_call_operand.hbm [shape: f32[2,8,32], index: 0, kind: input, shape index: {}]
  %s1 = inlined_call_operand.hbm [shape: f32[8,32], index: 1, kind: input, shape index: {}]
  %s2 = inlined_call_operand.vmem [shape: f32[1,96], index: 2, kind: input, shape index: {}]
  %s3 = inlined_call_operand.hbm [shape: f32[32,96], index: 3, kind: input, shape index: {}]
  %s4 = inlined_call_operand.hbm [shape: f32[32,32], index: 4, kind: input, shape index: {}]
  %s5 = inlined_call_operand.hbm [shape: f32[2,32,32], index: 5, kind: input, shape index: {}]
  %s6 = inlined_call_operand.hbm [shape: f32[2,8,32], index: 6, kind: output, shape index: {0}]
  %s7 = inlined_call_operand.hbm [shape: f32[2,8,8], index: 7, kind: output, shape index: {1}]
  %8 = xla_tuple %s6, %s7
  %s9 = sld [smem:[#allocation0]]
  $region85: #{tpu_custom_call.1} parent=0
    _
  %s11 = ssub.s32 1, %s9
  %s12 = scalar_select 0, %s11, %s9
  $region1: #{tpu_custom_call.1} parent=0
    #allocation2 [shape = 'u8[8192]{0}', space=vmem, size = 0x2000, scoped, tag = 'input window, operand 0']
    #allocation3 [shape = 's32[2]{0}', space=sflag, size = 0x8, scoped, tag = 'scoped memory for tpu_custom_call.1']
    #allocation4 [shape = 's32[2]{0}', space=sflag, size = 0x8, scoped, tag = 'scoped memory for tpu_custom_call.1']
    #allocation5 [shape = 'u8[4096]{0}', space=vmem, size = 0x1000, scoped, tag = 'input window, operand 1, single buffered']
    #allocation6 [shape = 's32[1]{0}', space=sflag, size = 0x4, scoped, tag = 'scoped memory for tpu_custom_call.1']
    #allocation7 [shape = 'u8[16384]{0}', space=vmem, size = 0x4000, scoped, tag = 'input window, operand 3, single buffered']
    #allocation8 [shape = 'u8[16384]{0}', space=vmem, size = 0x4000, scoped, tag = 'input window, operand 4, single buffered']
    #allocation9 [shape = 's32[1]{0}', space=sflag, size = 0x4, scoped, tag = 'scoped memory for tpu_custom_call.1']
    #allocation10 [shape = 'u8[32768]{0}', space=vmem, size = 0x8000, scoped, tag = 'input window, operand 5, single buffered']
    #allocation11 [shape = 'u8[8192]{0}', space=vmem, size = 0x2000, scoped, tag = 'output window, operand 0']
    #allocation12 [shape = 'u8[8192]{0}', space=vmem, size = 0x2000, scoped, tag = 'output window, operand 1']
    #allocation13 [shape = 's32[2]{0}', space=sflag, size = 0x8, scoped, tag = 'scoped memory for tpu_custom_call.1']
    %13 = vsyncpa [#allocation3], 0
    %s14 = scalar_lea.sflag [#allocation3], 1
    %15 = vsyncpa %s14, 0
    %16 = vsyncpa [#allocation6], 0
    %17 = vsyncpa [#allocation9], 0
    %18 = vsyncpa [#allocation4], 0
    %s19 = scalar_lea.sflag [#allocation4], 1
    %20 = vsyncpa %s19, 0
    %21 = vsyncpa [#allocation13], 0
    %s22 = scalar_lea.sflag [#allocation13], 1
    %23 = vsyncpa %s22, 0
    loop: start=0, step=1, limit=4
    $region2: #{tpu_custom_call.1} parent=1 // loop_pre_header
      _
    $region3: #{tpu_custom_call.1} parent=1 // loop_header
      %s25 = sphi 0, %s29
      %p26 = scmp.ge.s32.totalorder %s25, 4
      %s35 = sphi 0, %s37
      %s38 = sphi 0, %s35
      %s39 = sphi 0, %s38
      %s55 = sphi 0, %s39
      %s59 = sphi 0, %s59
      %s61 = sphi 0, %s59
      %s62 = sphi 0, %s61
      %s76 = sphi 0, %s62
      %s80 = sphi 0, %s80
      %s82 = sphi 0, %s80
      %s83 = sphi 0, %s82
      %s97 = sphi 0, %s83
      %s101 = sphi 0, %s101
      %s103 = sphi 0, %s101
      %s104 = sphi 0, %s103
      %s118 = sphi 0, %s104
      %s122 = sphi 0, %s122
      %s124 = sphi 0, %s122
      %s125 = sphi 0, %s124
      %s139 = sphi 0, %s125
      %s143 = sphi 0, %s143
      %s145 = sphi 0, %s143
      %s146 = sphi 0, %s145
      %s160 = sphi 0, %s146
      %s166 = sphi 0, %s168
      %s169 = sphi 0, %s166
      %s170 = sphi 0, %s169
      %s186 = sphi 0, %s170
      %s192 = sphi 0, %s194
      %s195 = sphi 0, %s192
      %s196 = sphi 0, %s195
      %s212 = sphi 0, %s196
    $region4: #{tpu_custom_call.1} parent=1 // loop_header_branch
      %28 = sbr.rel (%p26) target = $region8
    $region5: #{tpu_custom_call.1} parent=1 // loop_body
      %s30 = ssub.s32 %s25, 1
      %s31 = ssub.s32 %s25, 2
      %s32 = sadd.s32 %s25, 1
      %s33 = ssub.s32 %s25, %s32
      %p34 = scmp.eq.s32.totalorder %s33, 0
      %s36 = sadd.s32 %s35, 1
      %s37 = scalar_select %p34, %s35, %s36
      %p40 = pneg %p34
      %p41 = scmp.eq.s32.totalorder %s25, 1
      %p42 = por %p40, %p41
      %p43 = scmp.ne.s32.totalorder %s35, %s38
      %p44 = scmp.eq.s32.totalorder %s25, 0
      %p45 = por %p43, %p44
      %p46 = scmp.ne.s32.totalorder %s35, %s38
      %p47 = scmp.eq.s32.totalorder %s30, 1
      %p48 = por %p46, %p47
      %p49 = scmp.ne.s32.totalorder %s38, %s39
      %p50 = scmp.eq.s32.totalorder %s30, 0
      %p51 = por %p49, %p50
      %p52 = scmp.ne.s32.totalorder %s38, %s39
      %p53 = scmp.eq.s32.totalorder %s31, 1
      %p54 = por %p52, %p53
      %p56 = scmp.ne.s32.totalorder %s39, %s55
      %p57 = scmp.eq.s32.totalorder %s31, 0
      %p58 = por %p56, %p57
      %s60 = sadd.s32 %s59, 1
      %p63 = scmp.eq.s32.totalorder %s25, 1
      %p64 = scmp.ne.s32.totalorder %s59, %s61
      %p65 = scmp.eq.s32.totalorder %s25, 0
      %p66 = por %p64, %p65
      %p67 = scmp.ne.s32.totalorder %s59, %s61
      %p68 = scmp.eq.s32.totalorder %s30, 1
      %p69 = por %p67, %p68
      %p70 = scmp.ne.s32.totalorder %s61, %s62
      %p71 = scmp.eq.s32.totalorder %s30, 0
      %p72 = por %p70, %p71
      %p73 = scmp.ne.s32.totalorder %s61, %s62
      %p74 = scmp.eq.s32.totalorder %s31, 1
      %p75 = por %p73, %p74
      %p77 = scmp.ne.s32.totalorder %s62, %s76
      %p78 = scmp.eq.s32.totalorder %s31, 0
      %p79 = por %p77, %p78
      %s81 = sadd.s32 %s80, 1
      %p84 = scmp.eq.s32.totalorder %s25, 1
      %p85 = scmp.ne.s32.totalorder %s80, %s82
      %p86 = scmp.eq.s32.totalorder %s25, 0
      %p87 = por %p85, %p86
      %p88 = scmp.ne.s32.totalorder %s80, %s82
      %p89 = scmp.eq.s32.totalorder %s30, 1
      %p90 = por %p88, %p89
      %p91 = scmp.ne.s32.totalorder %s82, %s83
      %p92 = scmp.eq.s32.totalorder %s30, 0
      %p93 = por %p91, %p92
      %p94 = scmp.ne.s32.totalorder %s82, %s83
      %p95 = scmp.eq.s32.totalorder %s31, 1
      %p96 = por %p94, %p95
      %p98 = scmp.ne.s32.totalorder %s83, %s97
      %p99 = scmp.eq.s32.totalorder %s31, 0
      %p100 = por %p98, %p99
      %s102 = sadd.s32 %s101, 1
      %p105 = scmp.eq.s32.totalorder %s25, 1
      %p106 = scmp.ne.s32.totalorder %s101, %s103
      %p107 = scmp.eq.s32.totalorder %s25, 0
      %p108 = por %p106, %p107
      %p109 = scmp.ne.s32.totalorder %s101, %s103
      %p110 = scmp.eq.s32.totalorder %s30, 1
      %p111 = por %p109, %p110
      %p112 = scmp.ne.s32.totalorder %s103, %s104
      %p113 = scmp.eq.s32.totalorder %s30, 0
      %p114 = por %p112, %p113
      %p115 = scmp.ne.s32.totalorder %s103, %s104
      %p116 = scmp.eq.s32.totalorder %s31, 1
      %p117 = por %p115, %p116
      %p119 = scmp.ne.s32.totalorder %s104, %s118
      %p120 = scmp.eq.s32.totalorder %s31, 0
      %p121 = por %p119, %p120
      %s123 = sadd.s32 %s122, 1
      %p126 = scmp.eq.s32.totalorder %s25, 1
      %p127 = scmp.ne.s32.totalorder %s122, %s124
      %p128 = scmp.eq.s32.totalorder %s25, 0
      %p129 = por %p127, %p128
      %p130 = scmp.ne.s32.totalorder %s122, %s124
      %p131 = scmp.eq.s32.totalorder %s30, 1
      %p132 = por %p130, %p131
      %p133 = scmp.ne.s32.totalorder %s124, %s125
      %p134 = scmp.eq.s32.totalorder %s30, 0
      %p135 = por %p133, %p134
      %p136 = scmp.ne.s32.totalorder %s124, %s125
      %p137 = scmp.eq.s32.totalorder %s31, 1
      %p138 = por %p136, %p137
      %p140 = scmp.ne.s32.totalorder %s125, %s139
      %p141 = scmp.eq.s32.totalorder %s31, 0
      %p142 = por %p140, %p141
      %s144 = sadd.s32 %s143, 1
      %p147 = scmp.eq.s32.totalorder %s25, 1
      %p148 = scmp.ne.s32.totalorder %s143, %s145
      %p149 = scmp.eq.s32.totalorder %s25, 0
      %p150 = por %p148, %p149
      %p151 = scmp.ne.s32.totalorder %s143, %s145
      %p152 = scmp.eq.s32.totalorder %s30, 1
      %p153 = por %p151, %p152
      %p154 = scmp.ne.s32.totalorder %s145, %s146
      %p155 = scmp.eq.s32.totalorder %s30, 0
      %p156 = por %p154, %p155
      %p157 = scmp.ne.s32.totalorder %s145, %s146
      %p158 = scmp.eq.s32.totalorder %s31, 1
      %p159 = por %p157, %p158
      %p161 = scmp.ne.s32.totalorder %s146, %s160
      %p162 = scmp.eq.s32.totalorder %s31, 0
      %p163 = por %p161, %p162
      %s164 = ssub.s32 %s25, %s32
      %p165 = scmp.eq.s32.totalorder %s164, 0
      %s167 = sadd.s32 %s166, 1
      %s168 = scalar_select %p165, %s166, %s167
      %p171 = pneg %p165
      %p172 = scmp.eq.s32.totalorder %s25, 1
      %p173 = por %p171, %p172
      %p174 = scmp.ne.s32.totalorder %s166, %s169
      %p175 = scmp.eq.s32.totalorder %s25, 0
      %p176 = por %p174, %p175
      %p177 = scmp.ne.s32.totalorder %s166, %s169
      %p178 = scmp.eq.s32.totalorder %s30, 1
      %p179 = por %p177, %p178
      %p180 = scmp.ne.s32.totalorder %s169, %s170
      %p181 = scmp.eq.s32.totalorder %s30, 0
      %p182 = por %p180, %p181
      %p183 = scmp.ne.s32.totalorder %s169, %s170
      %p184 = scmp.eq.s32.totalorder %s31, 1
      %p185 = por %p183, %p184
      %p187 = scmp.ne.s32.totalorder %s170, %s186
      %p188 = scmp.eq.s32.totalorder %s31, 0
      %p189 = por %p187, %p188
      %s190 = ssub.s32 %s25, %s32
      %p191 = scmp.eq.s32.totalorder %s190, 0
      %s193 = sadd.s32 %s192, 1
      %s194 = scalar_select %p191, %s192, %s193
      %p197 = pneg %p191
      %p198 = scmp.eq.s32.totalorder %s25, 1
      %p199 = por %p197, %p198
      %p200 = scmp.ne.s32.totalorder %s192, %s195
      %p201 = scmp.eq.s32.totalorder %s25, 0
      %p202 = por %p200, %p201
      %p203 = scmp.ne.s32.totalorder %s192, %s195
      %p204 = scmp.eq.s32.totalorder %s30, 1
      %p205 = por %p203, %p204
      %p206 = scmp.ne.s32.totalorder %s195, %s196
      %p207 = scmp.eq.s32.totalorder %s30, 0
      %p208 = por %p206, %p207
      %p209 = scmp.ne.s32.totalorder %s195, %s196
      %p210 = scmp.eq.s32.totalorder %s31, 1
      %p211 = por %p209, %p210
      %p213 = scmp.ne.s32.totalorder %s196, %s212
      %p214 = scmp.eq.s32.totalorder %s31, 0
      %p215 = por %p213, %p214
      %p216 = scmp.le.s32.totalorder 1, %s25
      %p217 = scmp.lt.s32.totalorder %s25, 3
      %p218 = pnand %p216, %p217
      %p219 = pneg %p218
      // Predicated region
      $region9: #{tpu_custom_call.1} parent=5 // pred_check
        _
      $region10: #{tpu_custom_call.1} parent=5 // pred_check_branch
        %221 = sbr.rel (%p218) target = $region12
      $region11: #{tpu_custom_call.1} parent=5 // pred_region
        %s222 = ssub.s32 %s25, 1
        // Predicated region
        $region13: #{tpu_custom_call.1} parent=11 // pred_check
          %p223 = pneg %p72
        $region14: #{tpu_custom_call.1} parent=11 // pred_check_branch
          %225 = sbr.rel (%p223) target = $region16
        $region15: #{tpu_custom_call.1} parent=11 // pred_region
          %s227 = ssub.s32 128, 128
          %228 = vsyncadd [#allocation6], %s227
          %s230 = sshll.u32 [#allocation5], 4
          %s231 = int_to_ptr.vmem [resolvable:$true] %s230
          %233 = dma.hbm_to_vmem [thread:$0]  %s1, 128, %s231, [#allocation6]
        $region16: #{tpu_custom_call.1} parent=11 // pred_fallthru
          _
        // Predicated region
        $region17: #{tpu_custom_call.1} parent=11 // pred_check
          %p234 = pneg %p93
        $region18: #{tpu_custom_call.1} parent=11 // pred_check_branch
          %236 = sbr.rel (%p234) target = $region20
        $region19: #{tpu_custom_call.1} parent=11 // pred_region
          _
        $region20: #{tpu_custom_call.1} parent=11 // pred_fallthru
          _
        // Predicated region
        $region21: #{tpu_custom_call.1} parent=11 // pred_check
          %p237 = pneg %p114
        $region22: #{tpu_custom_call.1} parent=11 // pred_check_branch
          %239 = sbr.rel (%p237) target = $region24
        $region23: #{tpu_custom_call.1} parent=11 // pred_region
          %s241 = ssub.s32 512, 512
          %242 = vsyncadd [#allocation6], %s241
          %s243 = sshll.u32 [#allocation7], 4
          %s244 = int_to_ptr.vmem [resolvable:$true] %s243
          %249 = dma.hbm_to_vmem [thread:$0]  %s3, 512, %s244, [#allocation6], 128, 128, 8
        $region24: #{tpu_custom_call.1} parent=11 // pred_fallthru
          _
        // Predicated region
        $region25: #{tpu_custom_call.1} parent=11 // pred_check
          %p250 = pneg %p135
        $region26: #{tpu_custom_call.1} parent=11 // pred_check_branch
          %252 = sbr.rel (%p250) target = $region28
        $region27: #{tpu_custom_call.1} parent=11 // pred_region
          %s254 = ssub.s32 512, 512
          %255 = vsyncadd [#allocation9], %s254
          %s256 = sshll.u32 [#allocation8], 4
          %s257 = int_to_ptr.vmem [resolvable:$true] %s256
          %262 = dma.hbm_to_vmem [thread:$0]  %s4, 512, %s257, [#allocation9], 128, 128, 8
        $region28: #{tpu_custom_call.1} parent=11 // pred_fallthru
          _
        // Predicated region
        $region29: #{tpu_custom_call.1} parent=11 // pred_check
          %p263 = pneg %p156
        $region30: #{tpu_custom_call.1} parent=11 // pred_check_branch
          %265 = sbr.rel (%p263) target = $region32
        $region31: #{tpu_custom_call.1} parent=11 // pred_region
          %s267 = ssub.s32 1024, 1024
          %268 = vsyncadd [#allocation9], %s267
          %s269 = sshll.u32 [#allocation10], 4
          %s270 = int_to_ptr.vmem [resolvable:$true] %s269
          %275 = dma.hbm_to_vmem [thread:$0]  %s5, 1024, %s270, [#allocation9], 128, 128, 8
        $region32: #{tpu_custom_call.1} parent=11 // pred_fallthru
          _
      $region12: #{tpu_custom_call.1} parent=5 // pred_fallthru
        _
      %p276 = scmp.lt.s32.totalorder %s25, 2
      // Predicated region
      $region33: #{tpu_custom_call.1} parent=5 // pred_check
        %p277 = pneg %p276
      $region34: #{tpu_custom_call.1} parent=5 // pred_check_branch
        %279 = sbr.rel (%p277) target = $region36
      $region35: #{tpu_custom_call.1} parent=5 // pred_region
        // Predicated region
        $region37: #{tpu_custom_call.1} parent=35 // pred_check
          %p280 = pneg %p45
        $region38: #{tpu_custom_call.1} parent=35 // pred_check_branch
          %282 = sbr.rel (%p280) target = $region40
        $region39: #{tpu_custom_call.1} parent=35 // pred_region
          %s283 = sand.u32 %s35, 1
          %s284 = scalar_lea.sflag [#allocation3], %s283
          %s285 = sand.u32 %s35, 1
          %s286 = smul.addr %s285, 8
          %s287 = scalar_lea.vmem [#allocation2], %s286
          %s289 = ssub.s32 128, 128
          %290 = vsyncadd %s284, %s289
          %s291 = smul.addr %s25, 128
          %s292 = scalar_lea.hbm %s0, %s291
          %s294 = sshll.u32 %s287, 4
          %s295 = int_to_ptr.vmem [resolvable:$true] %s294
          %297 = dma.hbm_to_vmem [thread:$0]  %s292, 128, %s295, %s284
        $region40: #{tpu_custom_call.1} parent=35 // pred_fallthru
          _
      $region36: #{tpu_custom_call.1} parent=5 // pred_fallthru
        _
      %p298 = scmp.le.s32.totalorder 1, %s25
      %p299 = scmp.lt.s32.totalorder %s25, 3
      %p300 = pnand %p298, %p299
      %p301 = pneg %p300
      // Predicated region
      $region41: #{tpu_custom_call.1} parent=5 // pred_check
        _
      $region42: #{tpu_custom_call.1} parent=5 // pred_check_branch
        %303 = sbr.rel (%p300) target = $region44
      $region43: #{tpu_custom_call.1} parent=5 // pred_region
        %s304 = ssub.s32 %s25, 1
        %s305 = sand.u32 %s38, 1
        %s306 = scalar_lea.sflag [#allocation3], %s305
        %s307 = sand.u32 %s38, 1
        %s308 = smul.addr %s307, 8
        %s309 = scalar_lea.vmem [#allocation2], %s308
        // Predicated region
        $region45: #{tpu_custom_call.1} parent=43 // pred_check
          %p310 = pneg %p51
        $region46: #{tpu_custom_call.1} parent=43 // pred_check_branch
          %312 = sbr.rel (%p310) target = $region48
        $region47: #{tpu_custom_call.1} parent=43 // pred_region
          %313 = dma.done %s306, 128
        $region48: #{tpu_custom_call.1} parent=43 // pred_fallthru
          _
        // Predicated region
        $region49: #{tpu_custom_call.1} parent=43 // pred_check
          %p314 = pneg %p72
        $region50: #{tpu_custom_call.1} parent=43 // pred_check_branch
          %316 = sbr.rel (%p314) target = $region52
        $region51: #{tpu_custom_call.1} parent=43 // pred_region
          %317 = dma.done [#allocation6], 128
        $region52: #{tpu_custom_call.1} parent=43 // pred_fallthru
          _
        // Predicated region
        $region53: #{tpu_custom_call.1} parent=43 // pred_check
          %p318 = pneg %p114
        $region54: #{tpu_custom_call.1} parent=43 // pred_check_branch
          %320 = sbr.rel (%p318) target = $region56
        $region55: #{tpu_custom_call.1} parent=43 // pred_region
          %321 = dma.done [#allocation6], 512
        $region56: #{tpu_custom_call.1} parent=43 // pred_fallthru
          _
        // Predicated region
        $region57: #{tpu_custom_call.1} parent=43 // pred_check
          %p322 = pneg %p135
        $region58: #{tpu_custom_call.1} parent=43 // pred_check_branch
          %324 = sbr.rel (%p322) target = $region60
        $region59: #{tpu_custom_call.1} parent=43 // pred_region
          %325 = dma.done [#allocation9], 512
        $region60: #{tpu_custom_call.1} parent=43 // pred_fallthru
          _
        // Predicated region
        $region61: #{tpu_custom_call.1} parent=43 // pred_check
          %p326 = pneg %p156
        $region62: #{tpu_custom_call.1} parent=43 // pred_check_branch
          %328 = sbr.rel (%p326) target = $region64
        $region63: #{tpu_custom_call.1} parent=43 // pred_region
          %329 = dma.done [#allocation9], 1024
        $region64: #{tpu_custom_call.1} parent=43 // pred_fallthru
          _
        %s330 = sand.u32 %s38, 1
        %s331 = scalar_lea.sflag [#allocation3], %s330
        %s332 = sand.u32 %s38, 1
        %s333 = smul.addr %s332, 8
        %s334 = scalar_lea.vmem [#allocation2], %s333
        %p335 = pneg %p51
        %p336 = pneg %p48
        %p337 = pneg %p72
        %p338 = pneg %p69
        %p339 = pneg %p93
        %p340 = pneg %p90
        %p341 = pneg %p114
        %p342 = pneg %p111
        %p343 = pneg %p135
        %p344 = pneg %p132
        %p345 = pneg %p156
        %p346 = pneg %p153
        %p347 = pneg %p182
        %p348 = pneg %p179
        %s349 = sand.u32 %s169, 1
        %s350 = scalar_lea.sflag [#allocation4], %s349
        %s351 = sand.u32 %s169, 1
        %s352 = smul.addr %s351, 8
        %s353 = scalar_lea.vmem [#allocation11], %s352
        %p354 = pneg %p208
        %p355 = pneg %p205
        %s356 = sand.u32 %s195, 1
        %s357 = scalar_lea.sflag [#allocation13], %s356
        %s358 = sand.u32 %s195, 1
        %s359 = smul.addr %s358, 8
        %s360 = scalar_lea.vmem [#allocation12], %s359
        %v361 = vld [vmem:[%s309] sm:$0xff]
        %v362 = vld [vmem:[#allocation5] sm:$0xff]
        %vm363 = vcmask 261120
        %v364 = vsel %vm363, %v361, 0.0
        %365 = vadd.xlane.f32.xlu0 %v364
        %v366 = vpop.xlane.xlu0 %365
        %v367 = vrcp.pop 32.0
        %v368 = vmul.f32 %v366, %v367
        %v369 = vsub.f32 %v361, %v368
        %v370 = vmul.f32 %v369, %v369
        %v371 = vsel %vm363, %v370, 0.0
        %372 = vadd.xlane.f32.xlu0 %v371
        %v373 = vpop.xlane.xlu0 %372
        %v374 = vmul.f32 %v373, %v367
        %v375 = vadd.f32 %v374, 1e-05
        %v376 = vrsqrt.pop %v375
        %v377 = vmul.f32 %v369, %v376
        %v378 = vlaneseq
        %v379 = vshrl.u32 %v378, 7
        %v380 = vsub.s32 0, %v379
        %v381 = vrot.slane %v362, %v380
        %v382 = vmul.f32 %v377, %v381
        %v383 = vlaneseq
        %v384 = vshrl.u32 %v383, 7
        %v385 = vsub.s32 1, %v384
        %v386 = vrot.slane %v362, %v385
        %v387 = vadd.f32 %v382, %v386
        %v388 = vld [vmem:[#allocation7] sm:$0xff]
        %v389 = vld [vmem:[#allocation7 + $0x8] sm:$0xff]
        %v390 = vld [vmem:[#allocation7 + $0x10] sm:$0xff]
        %v391 = vld [vmem:[#allocation7 + $0x18] sm:$0xff]
        %v392 = vld [vmem:[%s2] sm:$0x1]
        %v394 = vlaneseq
        %v395 = vshrl.u32 %v394, 7
        %v396 = vsub.s32 0, %v395
        %v397 = vrot.slane %v392, %v396
        %v400 = vsel %vm363, %v387, 0
        %402 = vmatprep.subr.mxu0 0.0
        %403 = vmatpush1.msra.mxu0 %v388
        %404 = vmatprep.subr.mxu0 0.0
        %405 = vmatpush1.msra.mxu0 %v389
        %406 = vmatprep.subr.mxu0 0.0
        %407 = vmatpush1.msra.mxu0 %v390
        %408 = vmatprep.subr.mxu0 0.0
        %409 = vmatpush1.msra.mxu0 %v391
        %410 = vmatprep.subr.mxu0 0.0
        %411 = vmatpush1.msra.mxu0 0.0
        %412 = vmatprep.subr.mxu0 0.0
        %413 = vmatpush1.msra.mxu0 0.0
        %414 = vmatprep.subr.mxu0 0.0
        %415 = vmatpush1.msra.mxu0 0.0
        %416 = vmatprep.subr.mxu0 0.0
        %417 = vmatpush1.msra.mxu0 0.0
        %418 = vmatprep.subr.mxu0 0.0
        %419 = vmatpush1.msra.mxu0 0.0
        %420 = vmatprep.subr.mxu0 0.0
        %421 = vmatpush1.msra.mxu0 0.0
        %422 = vmatprep.subr.mxu0 0.0
        %423 = vmatpush1.msra.mxu0 0.0
        %424 = vmatprep.subr.mxu0 0.0
        %425 = vmatpush1.msra.mxu0 0.0
        %426 = vmatprep.subr.mxu0 0.0
        %427 = vmatpush1.msra.mxu0 0.0
        %428 = vmatprep.subr.mxu0 0.0
        %429 = vmatpush1.msra.mxu0 0.0
        %430 = vmatprep.subr.mxu0 0.0
        %431 = vmatpush1.msra.mxu0 0.0
        %432 = vmatprep.subr.mxu0 0.0
        %433 = vmatpush1.msra.mxu0 0.0
        %434 = vmatprep.subr.mxu0 0.0
        %435 = vmatpush1.msra.mxu0 0.0
        %436 = vmatprep.subr.mxu0 0.0
        %437 = vmatpush1.msra.mxu0 0.0
        %438 = vmatprep.subr.mxu0 0.0
        %439 = vmatpush1.msra.mxu0 0.0
        %440 = vmatprep.subr.mxu0 0.0
        %441 = vmatpush1.msra.mxu0 0.0
        %442 = vmatprep.subr.mxu0 0.0
        %443 = vmatpush1.msra.mxu0 0.0
        %444 = vmatprep.subr.mxu0 0.0
        %445 = vmatpush1.msra.mxu0 0.0
        %446 = vmatprep.subr.mxu0 0.0
        %447 = vmatpush1.msra.mxu0 0.0
        %448 = vmatprep.subr.mxu0 0.0
        %449 = vmatpush1.msra.mxu0 0.0
        %450 = vmatprep.subr.mxu0 0.0
        %451 = vmatpush1.msra.mxu0 0.0
        %452 = vmatprep.subr.mxu0 0.0
        %453 = vmatpush1.msra.mxu0 0.0
        %454 = vmatprep.subr.mxu0 0.0
        %455 = vmatpush1.msra.mxu0 0.0
        %456 = vmatprep.subr.mxu0 0.0
        %457 = vmatpush1.msra.mxu0 0.0
        %458 = vmatprep.subr.mxu0 0.0
        %459 = vmatpush1.msra.mxu0 0.0
        %460 = vmatprep.subr.mxu0 0.0
        %461 = vmatpush1.msra.mxu0 0.0
        %462 = vmatprep.subr.mxu0 0.0
        %463 = vmatpush1.msra.mxu0 0.0
        %464 = vmatprep.subr.mxu0 0.0
        %465 = vmatpush1.msra.mxu0 0.0
        %466 = vmatprep.mubr.f32.mxu0 0.0
        %467 = vmatmul.mubr.f32.gmra.mrb[0].mxu0 %v400
        %v468 = vpop.f32.mrb[0].mxu0
        %v469 = vadd.f32 %v397, %v468
        %v470 = vpop.f32.mrb[0].mxu0
        %471 = vdwg.mxu0
        %473 = vrot.lane.b32.xlu0 %v469, 124
        %v474 = vpop.permute.xlu0 %473
        %475 = vrot.lane.b32.xlu0 %v469, 120
        %v476 = vpop.permute.xlu0 %475
        %477 = vrot.lane.b32.xlu0 %v469, 116
        %v478 = vpop.permute.xlu0 %477
        %479 = vrot.lane.b32.xlu0 %v469, 112
        %v480 = vpop.permute.xlu0 %479
        %481 = vrot.lane.b32.xlu0 %v469, 108
        %v482 = vpop.permute.xlu0 %481
        %483 = vrot.lane.b32.xlu0 %v469, 104
        %v484 = vpop.permute.xlu0 %483
        %485 = vrot.lane.b32.xlu0 %v469, 100
        %v486 = vpop.permute.xlu0 %485
        %v487 = vlaneseq
        %v488 = vshrl.u32 %v487, 7
        %v489 = vlaneseq
        %v490 = vand.u32 %v489, 127
        %vm491 = vcmp.le.s32.totalorder %v490, %v488
        %v492 = vsel %vm491, 0.0, -1e+30
        %493 = vrot.lane.b32.xlu0 %v469, 96
        %v494 = vpop.permute.xlu0 %493
        %vm495 = vcmask 31744
        %v496 = vsel %vm495, %v469, 0
        %v498 = vsel %vm495, %v494, 0
        %500 = vmatprep.subr.mxu0 0.0
        %501 = vmatpush1.xpose.msra.mxu0 %v498
        %502 = vmatprep.subr.mxu0 0.0
        %503 = vmatpush1.xpose.msra.mxu0 0.0
        %504 = vmatprep.subr.mxu0 0.0
        %505 = vmatpush1.xpose.msra.mxu0 0.0
        %506 = vmatprep.subr.mxu0 0.0
        %507 = vmatpush1.xpose.msra.mxu0 0.0
        %508 = vmatprep.subr.mxu0 0.0
        %509 = vmatpush1.xpose.msra.mxu0 0.0
        %510 = vmatprep.subr.mxu0 0.0
        %511 = vmatpush1.xpose.msra.mxu0 0.0
        %512 = vmatprep.subr.mxu0 0.0
        %513 = vmatpush1.xpose.msra.mxu0 0.0
        %514 = vmatprep.subr.mxu0 0.0
        %515 = vmatpush1.xpose.msra.mxu0 0.0
        %516 = vmatprep.subr.mxu0 0.0
        %517 = vmatpush1.xpose.msra.mxu0 0.0
        %518 = vmatprep.subr.mxu0 0.0
        %519 = vmatpush1.xpose.msra.mxu0 0.0
        %520 = vmatprep.subr.mxu0 0.0
        %521 = vmatpush1.xpose.msra.mxu0 0.0
        %522 = vmatprep.subr.mxu0 0.0
        %523 = vmatpush1.xpose.msra.mxu0 0.0
        %524 = vmatprep.subr.mxu0 0.0
        %525 = vmatpush1.xpose.msra.mxu0 0.0
        %526 = vmatprep.subr.mxu0 0.0
        %527 = vmatpush1.xpose.msra.mxu0 0.0
        %528 = vmatprep.subr.mxu0 0.0
        %529 = vmatpush1.xpose.msra.mxu0 0.0
        %530 = vmatprep.subr.mxu0 0.0
        %531 = vmatpush1.xpose.msra.mxu0 0.0
        %532 = vmatprep.subr.mxu0 0.0
        %533 = vmatpush1.xpose.msra.mxu0 0.0
        %534 = vmatprep.subr.mxu0 0.0
        %535 = vmatpush1.xpose.msra.mxu0 0.0
        %536 = vmatprep.subr.mxu0 0.0
        %537 = vmatpush1.xpose.msra.mxu0 0.0
        %538 = vmatprep.subr.mxu0 0.0
        %539 = vmatpush1.xpose.msra.mxu0 0.0
        %540 = vmatprep.subr.mxu0 0.0
        %541 = vmatpush1.xpose.msra.mxu0 0.0
        %542 = vmatprep.subr.mxu0 0.0
        %543 = vmatpush1.xpose.msra.mxu0 0.0
        %544 = vmatprep.subr.mxu0 0.0
        %545 = vmatpush1.xpose.msra.mxu0 0.0
        %546 = vmatprep.subr.mxu0 0.0
        %547 = vmatpush1.xpose.msra.mxu0 0.0
        %548 = vmatprep.subr.mxu0 0.0
        %549 = vmatpush1.xpose.msra.mxu0 0.0
        %550 = vmatprep.subr.mxu0 0.0
        %551 = vmatpush1.xpose.msra.mxu0 0.0
        %552 = vmatprep.subr.mxu0 0.0
        %553 = vmatpush1.xpose.msra.mxu0 0.0
        %554 = vmatprep.subr.mxu0 0.0
        %555 = vmatpush1.xpose.msra.mxu0 0.0
        %556 = vmatprep.subr.mxu0 0.0
        %557 = vmatpush1.xpose.msra.mxu0 0.0
        %558 = vmatprep.subr.mxu0 0.0
        %559 = vmatpush1.xpose.msra.mxu0 0.0
        %560 = vmatprep.subr.mxu0 0.0
        %561 = vmatpush1.xpose.msra.mxu0 0.0
        %562 = vmatprep.subr.mxu0 0.0
        %563 = vmatpush1.xpose.msra.mxu0 0.0
        %564 = vmatprep.mubr.f32.mxu0 0.0
        %565 = vmatmul.mubr.f32.gmra.mrb[0].mxu0 %v496
        %v566 = vpop.f32.mrb[0].mxu0
        %v567 = vadd.f32 0.0, %v566
        %v568 = vpop.f32.mrb[0].mxu0
        %569 = vdwg.mxu0
        %570 = vrot.lane.b32.xlu0 %v474, 96
        %v571 = vpop.permute.xlu0 %570
        %v572 = vsel %vm495, %v474, 0
        %v574 = vsel %vm495, %v571, 0
        %576 = vmatprep.subr.mxu0 0.0
        %577 = vmatpush1.xpose.msra.mxu0 %v574
        %578 = vmatprep.subr.mxu0 0.0
        %579 = vmatpush1.xpose.msra.mxu0 0.0
        %580 = vmatprep.subr.mxu0 0.0
        %581 = vmatpush1.xpose.msra.mxu0 0.0
        %582 = vmatprep.subr.mxu0 0.0
        %583 = vmatpush1.xpose.msra.mxu0 0.0
        %584 = vmatprep.subr.mxu0 0.0
        %585 = vmatpush1.xpose.msra.mxu0 0.0
        %586 = vmatprep.subr.mxu0 0.0
        %587 = vmatpush1.xpose.msra.mxu0 0.0
        %588 = vmatprep.subr.mxu0 0.0
        %589 = vmatpush1.xpose.msra.mxu0 0.0
        %590 = vmatprep.subr.mxu0 0.0
        %591 = vmatpush1.xpose.msra.mxu0 0.0
        %592 = vmatprep.subr.mxu0 0.0
        %593 = vmatpush1.xpose.msra.mxu0 0.0
        %594 = vmatprep.subr.mxu0 0.0
        %595 = vmatpush1.xpose.msra.mxu0 0.0
        %596 = vmatprep.subr.mxu0 0.0
        %597 = vmatpush1.xpose.msra.mxu0 0.0
        %598 = vmatprep.subr.mxu0 0.0
        %599 = vmatpush1.xpose.msra.mxu0 0.0
        %600 = vmatprep.subr.mxu0 0.0
        %601 = vmatpush1.xpose.msra.mxu0 0.0
        %602 = vmatprep.subr.mxu0 0.0
        %603 = vmatpush1.xpose.msra.mxu0 0.0
        %604 = vmatprep.subr.mxu0 0.0
        %605 = vmatpush1.xpose.msra.mxu0 0.0
        %606 = vmatprep.subr.mxu0 0.0
        %607 = vmatpush1.xpose.msra.mxu0 0.0
        %608 = vmatprep.subr.mxu0 0.0
        %609 = vmatpush1.xpose.msra.mxu0 0.0
        %610 = vmatprep.subr.mxu0 0.0
        %611 = vmatpush1.xpose.msra.mxu0 0.0
        %612 = vmatprep.subr.mxu0 0.0
        %613 = vmatpush1.xpose.msra.mxu0 0.0
        %614 = vmatprep.subr.mxu0 0.0
        %615 = vmatpush1.xpose.msra.mxu0 0.0
        %616 = vmatprep.subr.mxu0 0.0
        %617 = vmatpush1.xpose.msra.mxu0 0.0
        %618 = vmatprep.subr.mxu0 0.0
        %619 = vmatpush1.xpose.msra.mxu0 0.0
        %620 = vmatprep.subr.mxu0 0.0
        %621 = vmatpush1.xpose.msra.mxu0 0.0
        %622 = vmatprep.subr.mxu0 0.0
        %623 = vmatpush1.xpose.msra.mxu0 0.0
        %624 = vmatprep.subr.mxu0 0.0
        %625 = vmatpush1.xpose.msra.mxu0 0.0
        %626 = vmatprep.subr.mxu0 0.0
        %627 = vmatpush1.xpose.msra.mxu0 0.0
        %628 = vmatprep.subr.mxu0 0.0
        %629 = vmatpush1.xpose.msra.mxu0 0.0
        %630 = vmatprep.subr.mxu0 0.0
        %631 = vmatpush1.xpose.msra.mxu0 0.0
        %632 = vmatprep.subr.mxu0 0.0
        %633 = vmatpush1.xpose.msra.mxu0 0.0
        %634 = vmatprep.subr.mxu0 0.0
        %635 = vmatpush1.xpose.msra.mxu0 0.0
        %636 = vmatprep.subr.mxu0 0.0
        %637 = vmatpush1.xpose.msra.mxu0 0.0
        %638 = vmatprep.subr.mxu0 0.0
        %639 = vmatpush1.xpose.msra.mxu0 0.0
        %640 = vmatprep.mubr.f32.mxu0 0.0
        %641 = vmatmul.mubr.f32.gmra.mrb[0].mxu0 %v572
        %v642 = vpop.f32.mrb[0].mxu0
        %v643 = vadd.f32 0.0, %v642
        %v644 = vpop.f32.mrb[0].mxu0
        %645 = vdwg.mxu0
        %646 = vrot.lane.b32.xlu0 %v476, 96
        %v647 = vpop.permute.xlu0 %646
        %v648 = vsel %vm495, %v476, 0
        %v650 = vsel %vm495, %v647, 0
        %652 = vmatprep.subr.mxu0 0.0
        %653 = vmatpush1.xpose.msra.mxu0 %v650
        %654 = vmatprep.subr.mxu0 0.0
        %655 = vmatpush1.xpose.msra.mxu0 0.0
        %656 = vmatprep.subr.mxu0 0.0
        %657 = vmatpush1.xpose.msra.mxu0 0.0
        %658 = vmatprep.subr.mxu0 0.0
        %659 = vmatpush1.xpose.msra.mxu0 0.0
        %660 = vmatprep.subr.mxu0 0.0
        %661 = vmatpush1.xpose.msra.mxu0 0.0
        %662 = vmatprep.subr.mxu0 0.0
        %663 = vmatpush1.xpose.msra.mxu0 0.0
        %664 = vmatprep.subr.mxu0 0.0
        %665 = vmatpush1.xpose.msra.mxu0 0.0
        %666 = vmatprep.subr.mxu0 0.0
        %667 = vmatpush1.xpose.msra.mxu0 0.0
        %668 = vmatprep.subr.mxu0 0.0
        %669 = vmatpush1.xpose.msra.mxu0 0.0
        %670 = vmatprep.subr.mxu0 0.0
        %671 = vmatpush1.xpose.msra.mxu0 0.0
        %672 = vmatprep.subr.mxu0 0.0
        %673 = vmatpush1.xpose.msra.mxu0 0.0
        %674 = vmatprep.subr.mxu0 0.0
        %675 = vmatpush1.xpose.msra.mxu0 0.0
        %676 = vmatprep.subr.mxu0 0.0
        %677 = vmatpush1.xpose.msra.mxu0 0.0
        %678 = vmatprep.subr.mxu0 0.0
        %679 = vmatpush1.xpose.msra.mxu0 0.0
        %680 = vmatprep.subr.mxu0 0.0
        %681 = vmatpush1.xpose.msra.mxu0 0.0
        %682 = vmatprep.subr.mxu0 0.0
        %683 = vmatpush1.xpose.msra.mxu0 0.0
        %684 = vmatprep.subr.mxu0 0.0
        %685 = vmatpush1.xpose.msra.mxu0 0.0
        %686 = vmatprep.subr.mxu0 0.0
        %687 = vmatpush1.xpose.msra.mxu0 0.0
        %688 = vmatprep.subr.mxu0 0.0
        %689 = vmatpush1.xpose.msra.mxu0 0.0
        %690 = vmatprep.subr.mxu0 0.0
        %691 = vmatpush1.xpose.msra.mxu0 0.0
        %692 = vmatprep.subr.mxu0 0.0
        %693 = vmatpush1.xpose.msra.mxu0 0.0
        %694 = vmatprep.subr.mxu0 0.0
        %695 = vmatpush1.xpose.msra.mxu0 0.0
        %696 = vmatprep.subr.mxu0 0.0
        %697 = vmatpush1.xpose.msra.mxu0 0.0
        %698 = vmatprep.subr.mxu0 0.0
        %699 = vmatpush1.xpose.msra.mxu0 0.0
        %700 = vmatprep.subr.mxu0 0.0
        %701 = vmatpush1.xpose.msra.mxu0 0.0
        %702 = vmatprep.subr.mxu0 0.0
        %703 = vmatpush1.xpose.msra.mxu0 0.0
        %704 = vmatprep.subr.mxu0 0.0
        %705 = vmatpush1.xpose.msra.mxu0 0.0
        %706 = vmatprep.subr.mxu0 0.0
        %707 = vmatpush1.xpose.msra.mxu0 0.0
        %708 = vmatprep.subr.mxu0 0.0
        %709 = vmatpush1.xpose.msra.mxu0 0.0
        %710 = vmatprep.subr.mxu0 0.0
        %711 = vmatpush1.xpose.msra.mxu0 0.0
        %712 = vmatprep.subr.mxu0 0.0
        %713 = vmatpush1.xpose.msra.mxu0 0.0
        %714 = vmatprep.subr.mxu0 0.0
        %715 = vmatpush1.xpose.msra.mxu0 0.0
        %716 = vmatprep.mubr.f32.mxu0 0.0
        %717 = vmatmul.mubr.f32.gmra.mrb[0].mxu0 %v648
        %v718 = vpop.f32.mrb[0].mxu0
        %v719 = vadd.f32 0.0, %v718
        %v720 = vpop.f32.mrb[0].mxu0
        %721 = vdwg.mxu0
        %722 = vrot.lane.b32.xlu0 %v478, 96
        %v723 = vpop.permute.xlu0 %722
        %v724 = vsel %vm495, %v478, 0
        %v726 = vsel %vm495, %v723, 0
        %728 = vmatprep.subr.mxu0 0.0
        %729 = vmatpush1.xpose.msra.mxu0 %v726
        %730 = vmatprep.subr.mxu0 0.0
        %731 = vmatpush1.xpose.msra.mxu0 0.0
        %732 = vmatprep.subr.mxu0 0.0
        %733 = vmatpush1.xpose.msra.mxu0 0.0
        %734 = vmatprep.subr.mxu0 0.0
        %735 = vmatpush1.xpose.msra.mxu0 0.0
        %736 = vmatprep.subr.mxu0 0.0
        %737 = vmatpush1.xpose.msra.mxu0 0.0
        %738 = vmatprep.subr.mxu0 0.0
        %739 = vmatpush1.xpose.msra.mxu0 0.0
        %740 = vmatprep.subr.mxu0 0.0
        %741 = vmatpush1.xpose.msra.mxu0 0.0
        %742 = vmatprep.subr.mxu0 0.0
        %743 = vmatpush1.xpose.msra.mxu0 0.0
        %744 = vmatprep.subr.mxu0 0.0
        %745 = vmatpush1.xpose.msra.mxu0 0.0
        %746 = vmatprep.subr.mxu0 0.0
        %747 = vmatpush1.xpose.msra.mxu0 0.0
        %748 = vmatprep.subr.mxu0 0.0
        %749 = vmatpush1.xpose.msra.mxu0 0.0
        %750 = vmatprep.subr.mxu0 0.0
        %751 = vmatpush1.xpose.msra.mxu0 0.0
        %752 = vmatprep.subr.mxu0 0.0
        %753 = vmatpush1.xpose.msra.mxu0 0.0
        %754 = vmatprep.subr.mxu0 0.0
        %755 = vmatpush1.xpose.msra.mxu0 0.0
        %756 = vmatprep.subr.mxu0 0.0
        %757 = vmatpush1.xpose.msra.mxu0 0.0
        %758 = vmatprep.subr.mxu0 0.0
        %759 = vmatpush1.xpose.msra.mxu0 0.0
        %760 = vmatprep.subr.mxu0 0.0
        %761 = vmatpush1.xpose.msra.mxu0 0.0
        %762 = vmatprep.subr.mxu0 0.0
        %763 = vmatpush1.xpose.msra.mxu0 0.0
        %764 = vmatprep.subr.mxu0 0.0
        %765 = vmatpush1.xpose.msra.mxu0 0.0
        %766 = vmatprep.subr.mxu0 0.0
        %767 = vmatpush1.xpose.msra.mxu0 0.0
        %768 = vmatprep.subr.mxu0 0.0
        %769 = vmatpush1.xpose.msra.mxu0 0.0
        %770 = vmatprep.subr.mxu0 0.0
        %771 = vmatpush1.xpose.msra.mxu0 0.0
        %772 = vmatprep.subr.mxu0 0.0
        %773 = vmatpush1.xpose.msra.mxu0 0.0
        %774 = vmatprep.subr.mxu0 0.0
        %775 = vmatpush1.xpose.msra.mxu0 0.0
        %776 = vmatprep.subr.mxu0 0.0
        %777 = vmatpush1.xpose.msra.mxu0 0.0
        %778 = vmatprep.subr.mxu0 0.0
        %779 = vmatpush1.xpose.msra.mxu0 0.0
        %780 = vmatprep.subr.mxu0 0.0
        %781 = vmatpush1.xpose.msra.mxu0 0.0
        %782 = vmatprep.subr.mxu0 0.0
        %783 = vmatpush1.xpose.msra.mxu0 0.0
        %784 = vmatprep.subr.mxu0 0.0
        %785 = vmatpush1.xpose.msra.mxu0 0.0
        %786 = vmatprep.subr.mxu0 0.0
        %787 = vmatpush1.xpose.msra.mxu0 0.0
        %788 = vmatprep.subr.mxu0 0.0
        %789 = vmatpush1.xpose.msra.mxu0 0.0
        %790 = vmatprep.subr.mxu0 0.0
        %791 = vmatpush1.xpose.msra.mxu0 0.0
        %792 = vmatprep.mubr.f32.mxu0 0.0
        %793 = vmatmul.mubr.f32.gmra.mrb[0].mxu0 %v724
        %v794 = vpop.f32.mrb[0].mxu0
        %v795 = vadd.f32 0.0, %v794
        %v796 = vpop.f32.mrb[0].mxu0
        %797 = vdwg.mxu0
        %798 = vrot.lane.b32.xlu0 %v480, 96
        %v799 = vpop.permute.xlu0 %798
        %v800 = vsel %vm495, %v480, 0
        %v802 = vsel %vm495, %v799, 0
        %804 = vmatprep.subr.mxu0 0.0
        %805 = vmatpush1.xpose.msra.mxu0 %v802
        %806 = vmatprep.subr.mxu0 0.0
        %807 = vmatpush1.xpose.msra.mxu0 0.0
        %808 = vmatprep.subr.mxu0 0.0
        %809 = vmatpush1.xpose.msra.mxu0 0.0
        %810 = vmatprep.subr.mxu0 0.0
        %811 = vmatpush1.xpose.msra.mxu0 0.0
        %812 = vmatprep.subr.mxu0 0.0
        %813 = vmatpush1.xpose.msra.mxu0 0.0
        %814 = vmatprep.subr.mxu0 0.0
        %815 = vmatpush1.xpose.msra.mxu0 0.0
        %816 = vmatprep.subr.mxu0 0.0
        %817 = vmatpush1.xpose.msra.mxu0 0.0
        %818 = vmatprep.subr.mxu0 0.0
        %819 = vmatpush1.xpose.msra.mxu0 0.0
        %820 = vmatprep.subr.mxu0 0.0
        %821 = vmatpush1.xpose.msra.mxu0 0.0
        %822 = vmatprep.subr.mxu0 0.0
        %823 = vmatpush1.xpose.msra.mxu0 0.0
        %824 = vmatprep.subr.mxu0 0.0
        %825 = vmatpush1.xpose.msra.mxu0 0.0
        %826 = vmatprep.subr.mxu0 0.0
        %827 = vmatpush1.xpose.msra.mxu0 0.0
        %828 = vmatprep.subr.mxu0 0.0
        %829 = vmatpush1.xpose.msra.mxu0 0.0
        %830 = vmatprep.subr.mxu0 0.0
        %831 = vmatpush1.xpose.msra.mxu0 0.0
        %832 = vmatprep.subr.mxu0 0.0
        %833 = vmatpush1.xpose.msra.mxu0 0.0
        %834 = vmatprep.subr.mxu0 0.0
        %835 = vmatpush1.xpose.msra.mxu0 0.0
        %836 = vmatprep.subr.mxu0 0.0
        %837 = vmatpush1.xpose.msra.mxu0 0.0
        %838 = vmatprep.subr.mxu0 0.0
        %839 = vmatpush1.xpose.msra.mxu0 0.0
        %840 = vmatprep.subr.mxu0 0.0
        %841 = vmatpush1.xpose.msra.mxu0 0.0
        %842 = vmatprep.subr.mxu0 0.0
        %843 = vmatpush1.xpose.msra.mxu0 0.0
        %844 = vmatprep.subr.mxu0 0.0
        %845 = vmatpush1.xpose.msra.mxu0 0.0
        %846 = vmatprep.subr.mxu0 0.0
        %847 = vmatpush1.xpose.msra.mxu0 0.0
        %848 = vmatprep.subr.mxu0 0.0
        %849 = vmatpush1.xpose.msra.mxu0 0.0
        %850 = vmatprep.subr.mxu0 0.0
        %851 = vmatpush1.xpose.msra.mxu0 0.0
        %852 = vmatprep.subr.mxu0 0.0
        %853 = vmatpush1.xpose.msra.mxu0 0.0
        %854 = vmatprep.subr.mxu0 0.0
        %855 = vmatpush1.xpose.msra.mxu0 0.0
        %856 = vmatprep.subr.mxu0 0.0
        %857 = vmatpush1.xpose.msra.mxu0 0.0
        %858 = vmatprep.subr.mxu0 0.0
        %859 = vmatpush1.xpose.msra.mxu0 0.0
        %860 = vmatprep.subr.mxu0 0.0
        %861 = vmatpush1.xpose.msra.mxu0 0.0
        %862 = vmatprep.subr.mxu0 0.0
        %863 = vmatpush1.xpose.msra.mxu0 0.0
        %864 = vmatprep.subr.mxu0 0.0
        %865 = vmatpush1.xpose.msra.mxu0 0.0
        %866 = vmatprep.subr.mxu0 0.0
        %867 = vmatpush1.xpose.msra.mxu0 0.0
        %868 = vmatprep.mubr.f32.mxu0 0.0
        %869 = vmatmul.mubr.f32.gmra.mrb[0].mxu0 %v800
        %v870 = vpop.f32.mrb[0].mxu0
        %v871 = vadd.f32 0.0, %v870
        %v872 = vpop.f32.mrb[0].mxu0
        %873 = vdwg.mxu0
        %874 = vrot.lane.b32.xlu0 %v482, 96
        %v875 = vpop.permute.xlu0 %874
        %v876 = vsel %vm495, %v482, 0
        %v878 = vsel %vm495, %v875, 0
        %880 = vmatprep.subr.mxu0 0.0
        %881 = vmatpush1.xpose.msra.mxu0 %v878
        %882 = vmatprep.subr.mxu0 0.0
        %883 = vmatpush1.xpose.msra.mxu0 0.0
        %884 = vmatprep.subr.mxu0 0.0
        %885 = vmatpush1.xpose.msra.mxu0 0.0
        %886 = vmatprep.subr.mxu0 0.0
        %887 = vmatpush1.xpose.msra.mxu0 0.0
        %888 = vmatprep.subr.mxu0 0.0
        %889 = vmatpush1.xpose.msra.mxu0 0.0
        %890 = vmatprep.subr.mxu0 0.0
        %891 = vmatpush1.xpose.msra.mxu0 0.0
        %892 = vmatprep.subr.mxu0 0.0
        %893 = vmatpush1.xpose.msra.mxu0 0.0
        %894 = vmatprep.subr.mxu0 0.0
        %895 = vmatpush1.xpose.msra.mxu0 0.0
        %896 = vmatprep.subr.mxu0 0.0
        %897 = vmatpush1.xpose.msra.mxu0 0.0
        %898 = vmatprep.subr.mxu0 0.0
        %899 = vmatpush1.xpose.msra.mxu0 0.0
        %900 = vmatprep.subr.mxu0 0.0
        %901 = vmatpush1.xpose.msra.mxu0 0.0
        %902 = vmatprep.subr.mxu0 0.0
        %903 = vmatpush1.xpose.msra.mxu0 0.0
        %904 = vmatprep.subr.mxu0 0.0
        %905 = vmatpush1.xpose.msra.mxu0 0.0
        %906 = vmatprep.subr.mxu0 0.0
        %907 = vmatpush1.xpose.msra.mxu0 0.0
        %908 = vmatprep.subr.mxu0 0.0
        %909 = vmatpush1.xpose.msra.mxu0 0.0
        %910 = vmatprep.subr.mxu0 0.0
        %911 = vmatpush1.xpose.msra.mxu0 0.0
        %912 = vmatprep.subr.mxu0 0.0
        %913 = vmatpush1.xpose.msra.mxu0 0.0
        %914 = vmatprep.subr.mxu0 0.0
        %915 = vmatpush1.xpose.msra.mxu0 0.0
        %916 = vmatprep.subr.mxu0 0.0
        %917 = vmatpush1.xpose.msra.mxu0 0.0
        %918 = vmatprep.subr.mxu0 0.0
        %919 = vmatpush1.xpose.msra.mxu0 0.0
        %920 = vmatprep.subr.mxu0 0.0
        %921 = vmatpush1.xpose.msra.mxu0 0.0
        %922 = vmatprep.subr.mxu0 0.0
        %923 = vmatpush1.xpose.msra.mxu0 0.0
        %924 = vmatprep.subr.mxu0 0.0
        %925 = vmatpush1.xpose.msra.mxu0 0.0
        %926 = vmatprep.subr.mxu0 0.0
        %927 = vmatpush1.xpose.msra.mxu0 0.0
        %928 = vmatprep.subr.mxu0 0.0
        %929 = vmatpush1.xpose.msra.mxu0 0.0
        %930 = vmatprep.subr.mxu0 0.0
        %931 = vmatpush1.xpose.msra.mxu0 0.0
        %932 = vmatprep.subr.mxu0 0.0
        %933 = vmatpush1.xpose.msra.mxu0 0.0
        %934 = vmatprep.subr.mxu0 0.0
        %935 = vmatpush1.xpose.msra.mxu0 0.0
        %936 = vmatprep.subr.mxu0 0.0
        %937 = vmatpush1.xpose.msra.mxu0 0.0
        %938 = vmatprep.subr.mxu0 0.0
        %939 = vmatpush1.xpose.msra.mxu0 0.0
        %940 = vmatprep.subr.mxu0 0.0
        %941 = vmatpush1.xpose.msra.mxu0 0.0
        %942 = vmatprep.subr.mxu0 0.0
        %943 = vmatpush1.xpose.msra.mxu0 0.0
        %944 = vmatprep.mubr.f32.mxu0 0.0
        %945 = vmatmul.mubr.f32.gmra.mrb[0].mxu0 %v876
        %v946 = vpop.f32.mrb[0].mxu0
        %v947 = vadd.f32 0.0, %v946
        %v948 = vpop.f32.mrb[0].mxu0
        %949 = vdwg.mxu0
        %950 = vrot.lane.b32.xlu0 %v484, 96
        %v951 = vpop.permute.xlu0 %950
        %v952 = vsel %vm495, %v484, 0
        %v954 = vsel %vm495, %v951, 0
        %956 = vmatprep.subr.mxu0 0.0
        %957 = vmatpush1.xpose.msra.mxu0 %v954
        %958 = vmatprep.subr.mxu0 0.0
        %959 = vmatpush1.xpose.msra.mxu0 0.0
        %960 = vmatprep.subr.mxu0 0.0
        %961 = vmatpush1.xpose.msra.mxu0 0.0
        %962 = vmatprep.subr.mxu0 0.0
        %963 = vmatpush1.xpose.msra.mxu0 0.0
        %964 = vmatprep.subr.mxu0 0.0
        %965 = vmatpush1.xpose.msra.mxu0 0.0
        %966 = vmatprep.subr.mxu0 0.0
        %967 = vmatpush1.xpose.msra.mxu0 0.0
        %968 = vmatprep.subr.mxu0 0.0
        %969 = vmatpush1.xpose.msra.mxu0 0.0
        %970 = vmatprep.subr.mxu0 0.0
        %971 = vmatpush1.xpose.msra.mxu0 0.0
        %972 = vmatprep.subr.mxu0 0.0
        %973 = vmatpush1.xpose.msra.mxu0 0.0
        %974 = vmatprep.subr.mxu0 0.0
        %975 = vmatpush1.xpose.msra.mxu0 0.0
        %976 = vmatprep.subr.mxu0 0.0
        %977 = vmatpush1.xpose.msra.mxu0 0.0
        %978 = vmatprep.subr.mxu0 0.0
        %979 = vmatpush1.xpose.msra.mxu0 0.0
        %980 = vmatprep.subr.mxu0 0.0
        %981 = vmatpush1.xpose.msra.mxu0 0.0
        %982 = vmatprep.subr.mxu0 0.0
        %983 = vmatpush1.xpose.msra.mxu0 0.0
        %984 = vmatprep.subr.mxu0 0.0
        %985 = vmatpush1.xpose.msra.mxu0 0.0
        %986 = vmatprep.subr.mxu0 0.0
        %987 = vmatpush1.xpose.msra.mxu0 0.0
        %988 = vmatprep.subr.mxu0 0.0
        %989 = vmatpush1.xpose.msra.mxu0 0.0
        %990 = vmatprep.subr.mxu0 0.0
        %991 = vmatpush1.xpose.msra.mxu0 0.0
        %992 = vmatprep.subr.mxu0 0.0
        %993 = vmatpush1.xpose.msra.mxu0 0.0
        %994 = vmatprep.subr.mxu0 0.0
        %995 = vmatpush1.xpose.msra.mxu0 0.0
        %996 = vmatprep.subr.mxu0 0.0
        %997 = vmatpush1.xpose.msra.mxu0 0.0
        %998 = vmatprep.subr.mxu0 0.0
        %999 = vmatpush1.xpose.msra.mxu0 0.0
        %1000 = vmatprep.subr.mxu0 0.0
        %1001 = vmatpush1.xpose.msra.mxu0 0.0
        %1002 = vmatprep.subr.mxu0 0.0
        %1003 = vmatpush1.xpose.msra.mxu0 0.0
        %1004 = vmatprep.subr.mxu0 0.0
        %1005 = vmatpush1.xpose.msra.mxu0 0.0
        %1006 = vmatprep.subr.mxu0 0.0
        %1007 = vmatpush1.xpose.msra.mxu0 0.0
        %1008 = vmatprep.subr.mxu0 0.0
        %1009 = vmatpush1.xpose.msra.mxu0 0.0
        %1010 = vmatprep.subr.mxu0 0.0
        %1011 = vmatpush1.xpose.msra.mxu0 0.0
        %1012 = vmatprep.subr.mxu0 0.0
        %1013 = vmatpush1.xpose.msra.mxu0 0.0
        %1014 = vmatprep.subr.mxu0 0.0
        %1015 = vmatpush1.xpose.msra.mxu0 0.0
        %1016 = vmatprep.subr.mxu0 0.0
        %1017 = vmatpush1.xpose.msra.mxu0 0.0
        %1018 = vmatprep.subr.mxu0 0.0
        %1019 = vmatpush1.xpose.msra.mxu0 0.0
        %1020 = vmatprep.mubr.f32.mxu0 0.0
        %1021 = vmatmul.mubr.f32.gmra.mrb[0].mxu0 %v952
        %v1022 = vpop.f32.mrb[0].mxu0
        %v1023 = vadd.f32 0.0, %v1022
        %v1024 = vpop.f32.mrb[0].mxu0
        %1025 = vdwg.mxu0
        %1026 = vrot.lane.b32.xlu0 %v486, 96
        %v1027 = vpop.permute.xlu0 %1026
        %v1028 = vsel %vm495, %v486, 0
        %v1030 = vsel %vm495, %v1027, 0
        %1032 = vmatprep.subr.mxu0 0.0
        %1033 = vmatpush1.xpose.msra.mxu0 %v1030
        %1034 = vmatprep.subr.mxu0 0.0
        %1035 = vmatpush1.xpose.msra.mxu0 0.0
        %1036 = vmatprep.subr.mxu0 0.0
        %1037 = vmatpush1.xpose.msra.mxu0 0.0
        %1038 = vmatprep.subr.mxu0 0.0
        %1039 = vmatpush1.xpose.msra.mxu0 0.0
        %1040 = vmatprep.subr.mxu0 0.0
        %1041 = vmatpush1.xpose.msra.mxu0 0.0
        %1042 = vmatprep.subr.mxu0 0.0
        %1043 = vmatpush1.xpose.msra.mxu0 0.0
        %1044 = vmatprep.subr.mxu0 0.0
        %1045 = vmatpush1.xpose.msra.mxu0 0.0
        %1046 = vmatprep.subr.mxu0 0.0
        %1047 = vmatpush1.xpose.msra.mxu0 0.0
        %1048 = vmatprep.subr.mxu0 0.0
        %1049 = vmatpush1.xpose.msra.mxu0 0.0
        %1050 = vmatprep.subr.mxu0 0.0
        %1051 = vmatpush1.xpose.msra.mxu0 0.0
        %1052 = vmatprep.subr.mxu0 0.0
        %1053 = vmatpush1.xpose.msra.mxu0 0.0
        %1054 = vmatprep.subr.mxu0 0.0
        %1055 = vmatpush1.xpose.msra.mxu0 0.0
        %1056 = vmatprep.subr.mxu0 0.0
        %1057 = vmatpush1.xpose.msra.mxu0 0.0
        %1058 = vmatprep.subr.mxu0 0.0
        %1059 = vmatpush1.xpose.msra.mxu0 0.0
        %1060 = vmatprep.subr.mxu0 0.0
        %1061 = vmatpush1.xpose.msra.mxu0 0.0
        %1062 = vmatprep.subr.mxu0 0.0
        %1063 = vmatpush1.xpose.msra.mxu0 0.0
        %1064 = vmatprep.subr.mxu0 0.0
        %1065 = vmatpush1.xpose.msra.mxu0 0.0
        %1066 = vmatprep.subr.mxu0 0.0
        %1067 = vmatpush1.xpose.msra.mxu0 0.0
        %1068 = vmatprep.subr.mxu0 0.0
        %1069 = vmatpush1.xpose.msra.mxu0 0.0
        %1070 = vmatprep.subr.mxu0 0.0
        %1071 = vmatpush1.xpose.msra.mxu0 0.0
        %1072 = vmatprep.subr.mxu0 0.0
        %1073 = vmatpush1.xpose.msra.mxu0 0.0
        %1074 = vmatprep.subr.mxu0 0.0
        %1075 = vmatpush1.xpose.msra.mxu0 0.0
        %1076 = vmatprep.subr.mxu0 0.0
        %1077 = vmatpush1.xpose.msra.mxu0 0.0
        %1078 = vmatprep.subr.mxu0 0.0
        %1079 = vmatpush1.xpose.msra.mxu0 0.0
        %1080 = vmatprep.subr.mxu0 0.0
        %1081 = vmatpush1.xpose.msra.mxu0 0.0
        %1082 = vmatprep.subr.mxu0 0.0
        %1083 = vmatpush1.xpose.msra.mxu0 0.0
        %1084 = vmatprep.subr.mxu0 0.0
        %1085 = vmatpush1.xpose.msra.mxu0 0.0
        %1086 = vmatprep.subr.mxu0 0.0
        %1087 = vmatpush1.xpose.msra.mxu0 0.0
        %1088 = vmatprep.subr.mxu0 0.0
        %1089 = vmatpush1.xpose.msra.mxu0 0.0
        %1090 = vmatprep.subr.mxu0 0.0
        %1091 = vmatpush1.xpose.msra.mxu0 0.0
        %1092 = vmatprep.subr.mxu0 0.0
        %1093 = vmatpush1.xpose.msra.mxu0 0.0
        %1094 = vmatprep.subr.mxu0 0.0
        %1095 = vmatpush1.xpose.msra.mxu0 0.0
        %1096 = vmatprep.mubr.f32.mxu0 0.0
        %1097 = vmatmul.mubr.f32.gmra.mrb[0].mxu0 %v1028
        %v1098 = vpop.f32.mrb[0].mxu0
        %v1099 = vadd.f32 0.0, %v1098
        %v1100 = vpop.f32.mrb[0].mxu0
        %1101 = vdwg.mxu0
        %v1102 = vmul.f32 %v567, 0.5
        %v1103 = vmul.f32 %v643, 0.5
        %v1104 = vmul.f32 %v719, 0.5
        %v1105 = vmul.f32 %v795, 0.5
        %v1106 = vmul.f32 %v871, 0.5
        %v1107 = vmul.f32 %v947, 0.5
        %v1108 = vmul.f32 %v1023, 0.5
        %v1109 = vmul.f32 %v1099, 0.5
        %v1110 = vadd.f32 %v1102, %v492
        %v1111 = vadd.f32 %v1103, %v492
        %v1112 = vadd.f32 %v1104, %v492
        %v1113 = vadd.f32 %v1105, %v492
        %v1114 = vadd.f32 %v1106, %v492
        %v1115 = vadd.f32 %v1107, %v492
        %v1116 = vadd.f32 %v1108, %v492
        %v1117 = vadd.f32 %v1109, %v492
        %vm1118 = vcmask 64512
        %v1119 = vsel %vm1118, %v1110, -inf
        %1120 = vmax.xlane.f32.xlu0 %v1119
        %v1121 = vpop.xlane.xlu0 %1120
        %v1122 = vsel %vm1118, %v1111, -inf
        %1123 = vmax.xlane.f32.xlu0 %v1122
        %v1124 = vpop.xlane.xlu0 %1123
        %v1125 = vsel %vm1118, %v1112, -inf
        %1126 = vmax.xlane.f32.xlu0 %v1125
        %v1127 = vpop.xlane.xlu0 %1126
        %v1128 = vsel %vm1118, %v1113, -inf
        %1129 = vmax.xlane.f32.xlu0 %v1128
        %v1130 = vpop.xlane.xlu0 %1129
        %v1131 = vsel %vm1118, %v1114, -inf
        %1132 = vmax.xlane.f32.xlu0 %v1131
        %v1133 = vpop.xlane.xlu0 %1132
        %v1134 = vsel %vm1118, %v1115, -inf
        %1135 = vmax.xlane.f32.xlu0 %v1134
        %v1136 = vpop.xlane.xlu0 %1135
        %v1137 = vsel %vm1118, %v1116, -inf
        %1138 = vmax.xlane.f32.xlu0 %v1137
        %v1139 = vpop.xlane.xlu0 %1138
        %v1140 = vsel %vm1118, %v1117, -inf
        %1141 = vmax.xlane.f32.xlu0 %v1140
        %v1142 = vpop.xlane.xlu0 %1141
        %v1143 = vsub.f32 %v1110, %v1121
        %v1144 = vsub.f32 %v1111, %v1124
        %v1145 = vsub.f32 %v1112, %v1127
        %v1146 = vsub.f32 %v1113, %v1130
        %v1147 = vsub.f32 %v1114, %v1133
        %v1148 = vsub.f32 %v1115, %v1136
        %v1149 = vsub.f32 %v1116, %v1139
        %v1150 = vsub.f32 %v1117, %v1142
        %v1151 = vmul.f32 %v1143, 1.442695
        %v1152 = vpow.pop %v1151
        %v1153 = vmul.f32 %v1144, 1.442695
        %v1154 = vpow.pop %v1153
        %v1155 = vmul.f32 %v1145, 1.442695
        %v1156 = vpow.pop %v1155
        %v1157 = vmul.f32 %v1146, 1.442695
        %v1158 = vpow.pop %v1157
        %v1159 = vmul.f32 %v1147, 1.442695
        %v1160 = vpow.pop %v1159
        %v1161 = vmul.f32 %v1148, 1.442695
        %v1162 = vpow.pop %v1161
        %v1163 = vmul.f32 %v1149, 1.442695
        %v1164 = vpow.pop %v1163
        %v1165 = vmul.f32 %v1150, 1.442695
        %v1166 = vpow.pop %v1165
        %v1167 = vsel %vm1118, %v1152, 0.0
        %1168 = vadd.xlane.f32.xlu0 %v1167
        %v1169 = vpop.xlane.xlu0 %1168
        %v1170 = vsel %vm1118, %v1154, 0.0
        %1171 = vadd.xlane.f32.xlu0 %v1170
        %v1172 = vpop.xlane.xlu0 %1171
        %v1173 = vsel %vm1118, %v1156, 0.0
        %1174 = vadd.xlane.f32.xlu0 %v1173
        %v1175 = vpop.xlane.xlu0 %1174
        %v1176 = vsel %vm1118, %v1158, 0.0
        %1177 = vadd.xlane.f32.xlu0 %v1176
        %v1178 = vpop.xlane.xlu0 %1177
        %v1179 = vsel %vm1118, %v1160, 0.0
        %1180 = vadd.xlane.f32.xlu0 %v1179
        %v1181 = vpop.xlane.xlu0 %1180
        %v1182 = vsel %vm1118, %v1162, 0.0
        %1183 = vadd.xlane.f32.xlu0 %v1182
        %v1184 = vpop.xlane.xlu0 %1183
        %v1185 = vsel %vm1118, %v1164, 0.0
        %1186 = vadd.xlane.f32.xlu0 %v1185
        %v1187 = vpop.xlane.xlu0 %1186
        %v1188 = vsel %vm1118, %v1166, 0.0
        %1189 = vadd.xlane.f32.xlu0 %v1188
        %v1190 = vpop.xlane.xlu0 %1189
        %v1191 = vrcp.pop %v1169
        %v1192 = vrcp.pop %v1172
        %v1193 = vrcp.pop %v1175
        %v1194 = vrcp.pop %v1178
        %v1195 = vrcp.pop %v1181
        %v1196 = vrcp.pop %v1184
        %v1197 = vrcp.pop %v1187
        %v1198 = vrcp.pop %v1190
        %v1199 = vmul.f32 %v1169, %v1191
        %v1200 = vmul.f32 %v1172, %v1192
        %v1201 = vmul.f32 %v1175, %v1193
        %v1202 = vmul.f32 %v1178, %v1194
        %v1203 = vmul.f32 %v1181, %v1195
        %v1204 = vmul.f32 %v1184, %v1196
        %v1205 = vmul.f32 %v1187, %v1197
        %v1206 = vmul.f32 %v1190, %v1198
        %v1207 = vsub.f32 2.0, %v1199
        %v1208 = vsub.f32 2.0, %v1200
        %v1209 = vsub.f32 2.0, %v1201
        %v1210 = vsub.f32 2.0, %v1202
        %v1211 = vsub.f32 2.0, %v1203
        %v1212 = vsub.f32 2.0, %v1204
        %v1213 = vsub.f32 2.0, %v1205
        %v1214 = vsub.f32 2.0, %v1206
        %v1215 = vmul.f32 %v1191, %v1207
        %v1216 = vmul.f32 %v1192, %v1208
        %v1217 = vmul.f32 %v1193, %v1209
        %v1218 = vmul.f32 %v1194, %v1210
        %v1219 = vmul.f32 %v1195, %v1211
        %v1220 = vmul.f32 %v1196, %v1212
        %v1221 = vmul.f32 %v1197, %v1213
        %v1222 = vmul.f32 %v1198, %v1214
        %v1223 = vmul.f32 %v1152, %v1215
        %v1224 = vmul.f32 %v1154, %v1216
        %v1225 = vmul.f32 %v1156, %v1217
        %v1226 = vmul.f32 %v1158, %v1218
        %v1227 = vmul.f32 %v1160, %v1219
        %v1228 = vmul.f32 %v1162, %v1220
        %v1229 = vmul.f32 %v1164, %v1221
        %v1230 = vmul.f32 %v1166, %v1222
        %1231 = vrot.lane.b32.xlu0 %v469, 64
        %v1232 = vpop.permute.xlu0 %1231
        %v1235 = vsel %vm1118, %v1223, 0
        %1237 = vmatprep.subr.mxu0 0.0
        %1238 = vmatpush1.msra.mxu0 %v1232
        %1239 = vmatprep.subr.mxu0 0.0
        %1240 = vmatpush1.msra.mxu0 0.0
        %1241 = vmatprep.subr.mxu0 0.0
        %1242 = vmatpush1.msra.mxu0 0.0
        %1243 = vmatprep.subr.mxu0 0.0
        %1244 = vmatpush1.msra.mxu0 0.0
        %1245 = vmatprep.subr.mxu0 0.0
        %1246 = vmatpush1.msra.mxu0 0.0
        %1247 = vmatprep.subr.mxu0 0.0
        %1248 = vmatpush1.msra.mxu0 0.0
        %1249 = vmatprep.subr.mxu0 0.0
        %1250 = vmatpush1.msra.mxu0 0.0
        %1251 = vmatprep.subr.mxu0 0.0
        %1252 = vmatpush1.msra.mxu0 0.0
        %1253 = vmatprep.subr.mxu0 0.0
        %1254 = vmatpush1.msra.mxu0 0.0
        %1255 = vmatprep.subr.mxu0 0.0
        %1256 = vmatpush1.msra.mxu0 0.0
        %1257 = vmatprep.subr.mxu0 0.0
        %1258 = vmatpush1.msra.mxu0 0.0
        %1259 = vmatprep.subr.mxu0 0.0
        %1260 = vmatpush1.msra.mxu0 0.0
        %1261 = vmatprep.subr.mxu0 0.0
        %1262 = vmatpush1.msra.mxu0 0.0
        %1263 = vmatprep.subr.mxu0 0.0
        %1264 = vmatpush1.msra.mxu0 0.0
        %1265 = vmatprep.subr.mxu0 0.0
        %1266 = vmatpush1.msra.mxu0 0.0
        %1267 = vmatprep.subr.mxu0 0.0
        %1268 = vmatpush1.msra.mxu0 0.0
        %1269 = vmatprep.subr.mxu0 0.0
        %1270 = vmatpush1.msra.mxu0 0.0
        %1271 = vmatprep.subr.mxu0 0.0
        %1272 = vmatpush1.msra.mxu0 0.0
        %1273 = vmatprep.subr.mxu0 0.0
        %1274 = vmatpush1.msra.mxu0 0.0
        %1275 = vmatprep.subr.mxu0 0.0
        %1276 = vmatpush1.msra.mxu0 0.0
        %1277 = vmatprep.subr.mxu0 0.0
        %1278 = vmatpush1.msra.mxu0 0.0
        %1279 = vmatprep.subr.mxu0 0.0
        %1280 = vmatpush1.msra.mxu0 0.0
        %1281 = vmatprep.subr.mxu0 0.0
        %1282 = vmatpush1.msra.mxu0 0.0
        %1283 = vmatprep.subr.mxu0 0.0
        %1284 = vmatpush1.msra.mxu0 0.0
        %1285 = vmatprep.subr.mxu0 0.0
        %1286 = vmatpush1.msra.mxu0 0.0
        %1287 = vmatprep.subr.mxu0 0.0
        %1288 = vmatpush1.msra.mxu0 0.0
        %1289 = vmatprep.subr.mxu0 0.0
        %1290 = vmatpush1.msra.mxu0 0.0
        %1291 = vmatprep.subr.mxu0 0.0
        %1292 = vmatpush1.msra.mxu0 0.0
        %1293 = vmatprep.subr.mxu0 0.0
        %1294 = vmatpush1.msra.mxu0 0.0
        %1295 = vmatprep.subr.mxu0 0.0
        %1296 = vmatpush1.msra.mxu0 0.0
        %1297 = vmatprep.subr.mxu0 0.0
        %1298 = vmatpush1.msra.mxu0 0.0
        %1299 = vmatprep.subr.mxu0 0.0
        %1300 = vmatpush1.msra.mxu0 0.0
        %1301 = vmatprep.mubr.f32.mxu0 0.0
        %1302 = vmatmul.mubr.f32.gmra.mrb[0].mxu0 %v1235
        %v1303 = vpop.f32.mrb[0].mxu0
        %v1304 = vadd.f32 0.0, %v1303
        %v1305 = vpop.f32.mrb[0].mxu0
        %1306 = vdwg.mxu0
        %1307 = vrot.lane.b32.xlu0 %v474, 64
        %v1308 = vpop.permute.xlu0 %1307
        %v1311 = vsel %vm1118, %v1224, 0
        %1313 = vmatprep.subr.mxu0 0.0
        %1314 = vmatpush1.msra.mxu0 %v1308
        %1315 = vmatprep.subr.mxu0 0.0
        %1316 = vmatpush1.msra.mxu0 0.0
        %1317 = vmatprep.subr.mxu0 0.0
        %1318 = vmatpush1.msra.mxu0 0.0
        %1319 = vmatprep.subr.mxu0 0.0
        %1320 = vmatpush1.msra.mxu0 0.0
        %1321 = vmatprep.subr.mxu0 0.0
        %1322 = vmatpush1.msra.mxu0 0.0
        %1323 = vmatprep.subr.mxu0 0.0
        %1324 = vmatpush1.msra.mxu0 0.0
        %1325 = vmatprep.subr.mxu0 0.0
        %1326 = vmatpush1.msra.mxu0 0.0
        %1327 = vmatprep.subr.mxu0 0.0
        %1328 = vmatpush1.msra.mxu0 0.0
        %1329 = vmatprep.subr.mxu0 0.0
        %1330 = vmatpush1.msra.mxu0 0.0
        %1331 = vmatprep.subr.mxu0 0.0
        %1332 = vmatpush1.msra.mxu0 0.0
        %1333 = vmatprep.subr.mxu0 0.0
        %1334 = vmatpush1.msra.mxu0 0.0
        %1335 = vmatprep.subr.mxu0 0.0
        %1336 = vmatpush1.msra.mxu0 0.0
        %1337 = vmatprep.subr.mxu0 0.0
        %1338 = vmatpush1.msra.mxu0 0.0
        %1339 = vmatprep.subr.mxu0 0.0
        %1340 = vmatpush1.msra.mxu0 0.0
        %1341 = vmatprep.subr.mxu0 0.0
        %1342 = vmatpush1.msra.mxu0 0.0
        %1343 = vmatprep.subr.mxu0 0.0
        %1344 = vmatpush1.msra.mxu0 0.0
        %1345 = vmatprep.subr.mxu0 0.0
        %1346 = vmatpush1.msra.mxu0 0.0
        %1347 = vmatprep.subr.mxu0 0.0
        %1348 = vmatpush1.msra.mxu0 0.0
        %1349 = vmatprep.subr.mxu0 0.0
        %1350 = vmatpush1.msra.mxu0 0.0
        %1351 = vmatprep.subr.mxu0 0.0
        %1352 = vmatpush1.msra.mxu0 0.0
        %1353 = vmatprep.subr.mxu0 0.0
        %1354 = vmatpush1.msra.mxu0 0.0
        %1355 = vmatprep.subr.mxu0 0.0
        %1356 = vmatpush1.msra.mxu0 0.0
        %1357 = vmatprep.subr.mxu0 0.0
        %1358 = vmatpush1.msra.mxu0 0.0
        %1359 = vmatprep.subr.mxu0 0.0
        %1360 = vmatpush1.msra.mxu0 0.0
        %1361 = vmatprep.subr.mxu0 0.0
        %1362 = vmatpush1.msra.mxu0 0.0
        %1363 = vmatprep.subr.mxu0 0.0
        %1364 = vmatpush1.msra.mxu0 0.0
        %1365 = vmatprep.subr.mxu0 0.0
        %1366 = vmatpush1.msra.mxu0 0.0
        %1367 = vmatprep.subr.mxu0 0.0
        %1368 = vmatpush1.msra.mxu0 0.0
        %1369 = vmatprep.subr.mxu0 0.0
        %1370 = vmatpush1.msra.mxu0 0.0
        %1371 = vmatprep.subr.mxu0 0.0
        %1372 = vmatpush1.msra.mxu0 0.0
        %1373 = vmatprep.subr.mxu0 0.0
        %1374 = vmatpush1.msra.mxu0 0.0
        %1375 = vmatprep.subr.mxu0 0.0
        %1376 = vmatpush1.msra.mxu0 0.0
        %1377 = vmatprep.mubr.f32.mxu0 0.0
        %1378 = vmatmul.mubr.f32.gmra.mrb[0].mxu0 %v1311
        %v1379 = vpop.f32.mrb[0].mxu0
        %v1380 = vadd.f32 0.0, %v1379
        %v1381 = vpop.f32.mrb[0].mxu0
        %1382 = vdwg.mxu0
        %1383 = vrot.lane.b32.xlu0 %v476, 64
        %v1384 = vpop.permute.xlu0 %1383
        %v1387 = vsel %vm1118, %v1225, 0
        %1389 = vmatprep.subr.mxu0 0.0
        %1390 = vmatpush1.msra.mxu0 %v1384
        %1391 = vmatprep.subr.mxu0 0.0
        %1392 = vmatpush1.msra.mxu0 0.0
        %1393 = vmatprep.subr.mxu0 0.0
        %1394 = vmatpush1.msra.mxu0 0.0
        %1395 = vmatprep.subr.mxu0 0.0
        %1396 = vmatpush1.msra.mxu0 0.0
        %1397 = vmatprep.subr.mxu0 0.0
        %1398 = vmatpush1.msra.mxu0 0.0
        %1399 = vmatprep.subr.mxu0 0.0
        %1400 = vmatpush1.msra.mxu0 0.0
        %1401 = vmatprep.subr.mxu0 0.0
        %1402 = vmatpush1.msra.mxu0 0.0
        %1403 = vmatprep.subr.mxu0 0.0
        %1404 = vmatpush1.msra.mxu0 0.0
        %1405 = vmatprep.subr.mxu0 0.0
        %1406 = vmatpush1.msra.mxu0 0.0
        %1407 = vmatprep.subr.mxu0 0.0
        %1408 = vmatpush1.msra.mxu0 0.0
        %1409 = vmatprep.subr.mxu0 0.0
        %1410 = vmatpush1.msra.mxu0 0.0
        %1411 = vmatprep.subr.mxu0 0.0
        %1412 = vmatpush1.msra.mxu0 0.0
        %1413 = vmatprep.subr.mxu0 0.0
        %1414 = vmatpush1.msra.mxu0 0.0
        %1415 = vmatprep.subr.mxu0 0.0
        %1416 = vmatpush1.msra.mxu0 0.0
        %1417 = vmatprep.subr.mxu0 0.0
        %1418 = vmatpush1.msra.mxu0 0.0
        %1419 = vmatprep.subr.mxu0 0.0
        %1420 = vmatpush1.msra.mxu0 0.0
        %1421 = vmatprep.subr.mxu0 0.0
        %1422 = vmatpush1.msra.mxu0 0.0
        %1423 = vmatprep.subr.mxu0 0.0
        %1424 = vmatpush1.msra.mxu0 0.0
        %1425 = vmatprep.subr.mxu0 0.0
        %1426 = vmatpush1.msra.mxu0 0.0
        %1427 = vmatprep.subr.mxu0 0.0
        %1428 = vmatpush1.msra.mxu0 0.0
        %1429 = vmatprep.subr.mxu0 0.0
        %1430 = vmatpush1.msra.mxu0 0.0
        %1431 = vmatprep.subr.mxu0 0.0
        %1432 = vmatpush1.msra.mxu0 0.0
        %1433 = vmatprep.subr.mxu0 0.0
        %1434 = vmatpush1.msra.mxu0 0.0
        %1435 = vmatprep.subr.mxu0 0.0
        %1436 = vmatpush1.msra.mxu0 0.0
        %1437 = vmatprep.subr.mxu0 0.0
        %1438 = vmatpush1.msra.mxu0 0.0
        %1439 = vmatprep.subr.mxu0 0.0
        %1440 = vmatpush1.msra.mxu0 0.0
        %1441 = vmatprep.subr.mxu0 0.0
        %1442 = vmatpush1.msra.mxu0 0.0
        %1443 = vmatprep.subr.mxu0 0.0
        %1444 = vmatpush1.msra.mxu0 0.0
        %1445 = vmatprep.subr.mxu0 0.0
        %1446 = vmatpush1.msra.mxu0 0.0
        %1447 = vmatprep.subr.mxu0 0.0
        %1448 = vmatpush1.msra.mxu0 0.0
        %1449 = vmatprep.subr.mxu0 0.0
        %1450 = vmatpush1.msra.mxu0 0.0
        %1451 = vmatprep.subr.mxu0 0.0
        %1452 = vmatpush1.msra.mxu0 0.0
        %1453 = vmatprep.mubr.f32.mxu0 0.0
        %1454 = vmatmul.mubr.f32.gmra.mrb[0].mxu0 %v1387
        %v1455 = vpop.f32.mrb[0].mxu0
        %v1456 = vadd.f32 0.0, %v1455
        %v1457 = vpop.f32.mrb[0].mxu0
        %1458 = vdwg.mxu0
        %1459 = vrot.lane.b32.xlu0 %v478, 64
        %v1460 = vpop.permute.xlu0 %1459
        %v1463 = vsel %vm1118, %v1226, 0
        %1465 = vmatprep.subr.mxu0 0.0
        %1466 = vmatpush1.msra.mxu0 %v1460
        %1467 = vmatprep.subr.mxu0 0.0
        %1468 = vmatpush1.msra.mxu0 0.0
        %1469 = vmatprep.subr.mxu0 0.0
        %1470 = vmatpush1.msra.mxu0 0.0
        %1471 = vmatprep.subr.mxu0 0.0
        %1472 = vmatpush1.msra.mxu0 0.0
        %1473 = vmatprep.subr.mxu0 0.0
        %1474 = vmatpush1.msra.mxu0 0.0
        %1475 = vmatprep.subr.mxu0 0.0
        %1476 = vmatpush1.msra.mxu0 0.0
        %1477 = vmatprep.subr.mxu0 0.0
        %1478 = vmatpush1.msra.mxu0 0.0
        %1479 = vmatprep.subr.mxu0 0.0
        %1480 = vmatpush1.msra.mxu0 0.0
        %1481 = vmatprep.subr.mxu0 0.0
        %1482 = vmatpush1.msra.mxu0 0.0
        %1483 = vmatprep.subr.mxu0 0.0
        %1484 = vmatpush1.msra.mxu0 0.0
        %1485 = vmatprep.subr.mxu0 0.0
        %1486 = vmatpush1.msra.mxu0 0.0
        %1487 = vmatprep.subr.mxu0 0.0
        %1488 = vmatpush1.msra.mxu0 0.0
        %1489 = vmatprep.subr.mxu0 0.0
        %1490 = vmatpush1.msra.mxu0 0.0
        %1491 = vmatprep.subr.mxu0 0.0
        %1492 = vmatpush1.msra.mxu0 0.0
        %1493 = vmatprep.subr.mxu0 0.0
        %1494 = vmatpush1.msra.mxu0 0.0
        %1495 = vmatprep.subr.mxu0 0.0
        %1496 = vmatpush1.msra.mxu0 0.0
        %1497 = vmatprep.subr.mxu0 0.0
        %1498 = vmatpush1.msra.mxu0 0.0
        %1499 = vmatprep.subr.mxu0 0.0
        %1500 = vmatpush1.msra.mxu0 0.0
        %1501 = vmatprep.subr.mxu0 0.0
        %1502 = vmatpush1.msra.mxu0 0.0
        %1503 = vmatprep.subr.mxu0 0.0
        %1504 = vmatpush1.msra.mxu0 0.0
        %1505 = vmatprep.subr.mxu0 0.0
        %1506 = vmatpush1.msra.mxu0 0.0
        %1507 = vmatprep.subr.mxu0 0.0
        %1508 = vmatpush1.msra.mxu0 0.0
        %1509 = vmatprep.subr.mxu0 0.0
        %1510 = vmatpush1.msra.mxu0 0.0
        %1511 = vmatprep.subr.mxu0 0.0
        %1512 = vmatpush1.msra.mxu0 0.0
        %1513 = vmatprep.subr.mxu0 0.0
        %1514 = vmatpush1.msra.mxu0 0.0
        %1515 = vmatprep.subr.mxu0 0.0
        %1516 = vmatpush1.msra.mxu0 0.0
        %1517 = vmatprep.subr.mxu0 0.0
        %1518 = vmatpush1.msra.mxu0 0.0
        %1519 = vmatprep.subr.mxu0 0.0
        %1520 = vmatpush1.msra.mxu0 0.0
        %1521 = vmatprep.subr.mxu0 0.0
        %1522 = vmatpush1.msra.mxu0 0.0
        %1523 = vmatprep.subr.mxu0 0.0
        %1524 = vmatpush1.msra.mxu0 0.0
        %1525 = vmatprep.subr.mxu0 0.0
        %1526 = vmatpush1.msra.mxu0 0.0
        %1527 = vmatprep.subr.mxu0 0.0
        %1528 = vmatpush1.msra.mxu0 0.0
        %1529 = vmatprep.mubr.f32.mxu0 0.0
        %1530 = vmatmul.mubr.f32.gmra.mrb[0].mxu0 %v1463
        %v1531 = vpop.f32.mrb[0].mxu0
        %v1532 = vadd.f32 0.0, %v1531
        %v1533 = vpop.f32.mrb[0].mxu0
        %1534 = vdwg.mxu0
        %1535 = vrot.lane.b32.xlu0 %v480, 64
        %v1536 = vpop.permute.xlu0 %1535
        %v1539 = vsel %vm1118, %v1227, 0
        %1541 = vmatprep.subr.mxu0 0.0
        %1542 = vmatpush1.msra.mxu0 %v1536
        %1543 = vmatprep.subr.mxu0 0.0
        %1544 = vmatpush1.msra.mxu0 0.0
        %1545 = vmatprep.subr.mxu0 0.0
        %1546 = vmatpush1.msra.mxu0 0.0
        %1547 = vmatprep.subr.mxu0 0.0
        %1548 = vmatpush1.msra.mxu0 0.0
        %1549 = vmatprep.subr.mxu0 0.0
        %1550 = vmatpush1.msra.mxu0 0.0
        %1551 = vmatprep.subr.mxu0 0.0
        %1552 = vmatpush1.msra.mxu0 0.0
        %1553 = vmatprep.subr.mxu0 0.0
        %1554 = vmatpush1.msra.mxu0 0.0
        %1555 = vmatprep.subr.mxu0 0.0
        %1556 = vmatpush1.msra.mxu0 0.0
        %1557 = vmatprep.subr.mxu0 0.0
        %1558 = vmatpush1.msra.mxu0 0.0
        %1559 = vmatprep.subr.mxu0 0.0
        %1560 = vmatpush1.msra.mxu0 0.0
        %1561 = vmatprep.subr.mxu0 0.0
        %1562 = vmatpush1.msra.mxu0 0.0
        %1563 = vmatprep.subr.mxu0 0.0
        %1564 = vmatpush1.msra.mxu0 0.0
        %1565 = vmatprep.subr.mxu0 0.0
        %1566 = vmatpush1.msra.mxu0 0.0
        %1567 = vmatprep.subr.mxu0 0.0
        %1568 = vmatpush1.msra.mxu0 0.0
        %1569 = vmatprep.subr.mxu0 0.0
        %1570 = vmatpush1.msra.mxu0 0.0
        %1571 = vmatprep.subr.mxu0 0.0
        %1572 = vmatpush1.msra.mxu0 0.0
        %1573 = vmatprep.subr.mxu0 0.0
        %1574 = vmatpush1.msra.mxu0 0.0
        %1575 = vmatprep.subr.mxu0 0.0
        %1576 = vmatpush1.msra.mxu0 0.0
        %1577 = vmatprep.subr.mxu0 0.0
        %1578 = vmatpush1.msra.mxu0 0.0
        %1579 = vmatprep.subr.mxu0 0.0
        %1580 = vmatpush1.msra.mxu0 0.0
        %1581 = vmatprep.subr.mxu0 0.0
        %1582 = vmatpush1.msra.mxu0 0.0
        %1583 = vmatprep.subr.mxu0 0.0
        %1584 = vmatpush1.msra.mxu0 0.0
        %1585 = vmatprep.subr.mxu0 0.0
        %1586 = vmatpush1.msra.mxu0 0.0
        %1587 = vmatprep.subr.mxu0 0.0
        %1588 = vmatpush1.msra.mxu0 0.0
        %1589 = vmatprep.subr.mxu0 0.0
        %1590 = vmatpush1.msra.mxu0 0.0
        %1591 = vmatprep.subr.mxu0 0.0
        %1592 = vmatpush1.msra.mxu0 0.0
        %1593 = vmatprep.subr.mxu0 0.0
        %1594 = vmatpush1.msra.mxu0 0.0
        %1595 = vmatprep.subr.mxu0 0.0
        %1596 = vmatpush1.msra.mxu0 0.0
        %1597 = vmatprep.subr.mxu0 0.0
        %1598 = vmatpush1.msra.mxu0 0.0
        %1599 = vmatprep.subr.mxu0 0.0
        %1600 = vmatpush1.msra.mxu0 0.0
        %1601 = vmatprep.subr.mxu0 0.0
        %1602 = vmatpush1.msra.mxu0 0.0
        %1603 = vmatprep.subr.mxu0 0.0
        %1604 = vmatpush1.msra.mxu0 0.0
        %1605 = vmatprep.mubr.f32.mxu0 0.0
        %1606 = vmatmul.mubr.f32.gmra.mrb[0].mxu0 %v1539
        %v1607 = vpop.f32.mrb[0].mxu0
        %v1608 = vadd.f32 0.0, %v1607
        %v1609 = vpop.f32.mrb[0].mxu0
        %1610 = vdwg.mxu0
        %1611 = vrot.lane.b32.xlu0 %v482, 64
        %v1612 = vpop.permute.xlu0 %1611
        %v1615 = vsel %vm1118, %v1228, 0
        %1617 = vmatprep.subr.mxu0 0.0
        %1618 = vmatpush1.msra.mxu0 %v1612
        %1619 = vmatprep.subr.mxu0 0.0
        %1620 = vmatpush1.msra.mxu0 0.0
        %1621 = vmatprep.subr.mxu0 0.0
        %1622 = vmatpush1.msra.mxu0 0.0
        %1623 = vmatprep.subr.mxu0 0.0
        %1624 = vmatpush1.msra.mxu0 0.0
        %1625 = vmatprep.subr.mxu0 0.0
        %1626 = vmatpush1.msra.mxu0 0.0
        %1627 = vmatprep.subr.mxu0 0.0
        %1628 = vmatpush1.msra.mxu0 0.0
        %1629 = vmatprep.subr.mxu0 0.0
        %1630 = vmatpush1.msra.mxu0 0.0
        %1631 = vmatprep.subr.mxu0 0.0
        %1632 = vmatpush1.msra.mxu0 0.0
        %1633 = vmatprep.subr.mxu0 0.0
        %1634 = vmatpush1.msra.mxu0 0.0
        %1635 = vmatprep.subr.mxu0 0.0
        %1636 = vmatpush1.msra.mxu0 0.0
        %1637 = vmatprep.subr.mxu0 0.0
        %1638 = vmatpush1.msra.mxu0 0.0
        %1639 = vmatprep.subr.mxu0 0.0
        %1640 = vmatpush1.msra.mxu0 0.0
        %1641 = vmatprep.subr.mxu0 0.0
        %1642 = vmatpush1.msra.mxu0 0.0
        %1643 = vmatprep.subr.mxu0 0.0
        %1644 = vmatpush1.msra.mxu0 0.0
        %1645 = vmatprep.subr.mxu0 0.0
        %1646 = vmatpush1.msra.mxu0 0.0
        %1647 = vmatprep.subr.mxu0 0.0
        %1648 = vmatpush1.msra.mxu0 0.0
        %1649 = vmatprep.subr.mxu0 0.0
        %1650 = vmatpush1.msra.mxu0 0.0
        %1651 = vmatprep.subr.mxu0 0.0
        %1652 = vmatpush1.msra.mxu0 0.0
        %1653 = vmatprep.subr.mxu0 0.0
        %1654 = vmatpush1.msra.mxu0 0.0
        %1655 = vmatprep.subr.mxu0 0.0
        %1656 = vmatpush1.msra.mxu0 0.0
        %1657 = vmatprep.subr.mxu0 0.0
        %1658 = vmatpush1.msra.mxu0 0.0
        %1659 = vmatprep.subr.mxu0 0.0
        %1660 = vmatpush1.msra.mxu0 0.0
        %1661 = vmatprep.subr.mxu0 0.0
        %1662 = vmatpush1.msra.mxu0 0.0
        %1663 = vmatprep.subr.mxu0 0.0
        %1664 = vmatpush1.msra.mxu0 0.0
        %1665 = vmatprep.subr.mxu0 0.0
        %1666 = vmatpush1.msra.mxu0 0.0
        %1667 = vmatprep.subr.mxu0 0.0
        %1668 = vmatpush1.msra.mxu0 0.0
        %1669 = vmatprep.subr.mxu0 0.0
        %1670 = vmatpush1.msra.mxu0 0.0
        %1671 = vmatprep.subr.mxu0 0.0
        %1672 = vmatpush1.msra.mxu0 0.0
        %1673 = vmatprep.subr.mxu0 0.0
        %1674 = vmatpush1.msra.mxu0 0.0
        %1675 = vmatprep.subr.mxu0 0.0
        %1676 = vmatpush1.msra.mxu0 0.0
        %1677 = vmatprep.subr.mxu0 0.0
        %1678 = vmatpush1.msra.mxu0 0.0
        %1679 = vmatprep.subr.mxu0 0.0
        %1680 = vmatpush1.msra.mxu0 0.0
        %1681 = vmatprep.mubr.f32.mxu0 0.0
        %1682 = vmatmul.mubr.f32.gmra.mrb[0].mxu0 %v1615
        %v1683 = vpop.f32.mrb[0].mxu0
        %v1684 = vadd.f32 0.0, %v1683
        %v1685 = vpop.f32.mrb[0].mxu0
        %1686 = vdwg.mxu0
        %1687 = vrot.lane.b32.xlu0 %v484, 64
        %v1688 = vpop.permute.xlu0 %1687
        %v1691 = vsel %vm1118, %v1229, 0
        %1693 = vmatprep.subr.mxu0 0.0
        %1694 = vmatpush1.msra.mxu0 %v1688
        %1695 = vmatprep.subr.mxu0 0.0
        %1696 = vmatpush1.msra.mxu0 0.0
        %1697 = vmatprep.subr.mxu0 0.0
        %1698 = vmatpush1.msra.mxu0 0.0
        %1699 = vmatprep.subr.mxu0 0.0
        %1700 = vmatpush1.msra.mxu0 0.0
        %1701 = vmatprep.subr.mxu0 0.0
        %1702 = vmatpush1.msra.mxu0 0.0
        %1703 = vmatprep.subr.mxu0 0.0
        %1704 = vmatpush1.msra.mxu0 0.0
        %1705 = vmatprep.subr.mxu0 0.0
        %1706 = vmatpush1.msra.mxu0 0.0
        %1707 = vmatprep.subr.mxu0 0.0
        %1708 = vmatpush1.msra.mxu0 0.0
        %1709 = vmatprep.subr.mxu0 0.0
        %1710 = vmatpush1.msra.mxu0 0.0
        %1711 = vmatprep.subr.mxu0 0.0
        %1712 = vmatpush1.msra.mxu0 0.0
        %1713 = vmatprep.subr.mxu0 0.0
        %1714 = vmatpush1.msra.mxu0 0.0
        %1715 = vmatprep.subr.mxu0 0.0
        %1716 = vmatpush1.msra.mxu0 0.0
        %1717 = vmatprep.subr.mxu0 0.0
        %1718 = vmatpush1.msra.mxu0 0.0
        %1719 = vmatprep.subr.mxu0 0.0
        %1720 = vmatpush1.msra.mxu0 0.0
        %1721 = vmatprep.subr.mxu0 0.0
        %1722 = vmatpush1.msra.mxu0 0.0
        %1723 = vmatprep.subr.mxu0 0.0
        %1724 = vmatpush1.msra.mxu0 0.0
        %1725 = vmatprep.subr.mxu0 0.0
        %1726 = vmatpush1.msra.mxu0 0.0
        %1727 = vmatprep.subr.mxu0 0.0
        %1728 = vmatpush1.msra.mxu0 0.0
        %1729 = vmatprep.subr.mxu0 0.0
        %1730 = vmatpush1.msra.mxu0 0.0
        %1731 = vmatprep.subr.mxu0 0.0
        %1732 = vmatpush1.msra.mxu0 0.0
        %1733 = vmatprep.subr.mxu0 0.0
        %1734 = vmatpush1.msra.mxu0 0.0
        %1735 = vmatprep.subr.mxu0 0.0
        %1736 = vmatpush1.msra.mxu0 0.0
        %1737 = vmatprep.subr.mxu0 0.0
        %1738 = vmatpush1.msra.mxu0 0.0
        %1739 = vmatprep.subr.mxu0 0.0
        %1740 = vmatpush1.msra.mxu0 0.0
        %1741 = vmatprep.subr.mxu0 0.0
        %1742 = vmatpush1.msra.mxu0 0.0
        %1743 = vmatprep.subr.mxu0 0.0
        %1744 = vmatpush1.msra.mxu0 0.0
        %1745 = vmatprep.subr.mxu0 0.0
        %1746 = vmatpush1.msra.mxu0 0.0
        %1747 = vmatprep.subr.mxu0 0.0
        %1748 = vmatpush1.msra.mxu0 0.0
        %1749 = vmatprep.subr.mxu0 0.0
        %1750 = vmatpush1.msra.mxu0 0.0
        %1751 = vmatprep.subr.mxu0 0.0
        %1752 = vmatpush1.msra.mxu0 0.0
        %1753 = vmatprep.subr.mxu0 0.0
        %1754 = vmatpush1.msra.mxu0 0.0
        %1755 = vmatprep.subr.mxu0 0.0
        %1756 = vmatpush1.msra.mxu0 0.0
        %1757 = vmatprep.mubr.f32.mxu0 0.0
        %1758 = vmatmul.mubr.f32.gmra.mrb[0].mxu0 %v1691
        %v1759 = vpop.f32.mrb[0].mxu0
        %v1760 = vadd.f32 0.0, %v1759
        %v1761 = vpop.f32.mrb[0].mxu0
        %1762 = vdwg.mxu0
        %1763 = vrot.lane.b32.xlu0 %v486, 64
        %v1764 = vpop.permute.xlu0 %1763
        %v1767 = vsel %vm1118, %v1230, 0
        %1769 = vmatprep.subr.mxu0 0.0
        %1770 = vmatpush1.msra.mxu0 %v1764
        %1771 = vmatprep.subr.mxu0 0.0
        %1772 = vmatpush1.msra.mxu0 0.0
        %1773 = vmatprep.subr.mxu0 0.0
        %1774 = vmatpush1.msra.mxu0 0.0
        %1775 = vmatprep.subr.mxu0 0.0
        %1776 = vmatpush1.msra.mxu0 0.0
        %1777 = vmatprep.subr.mxu0 0.0
        %1778 = vmatpush1.msra.mxu0 0.0
        %1779 = vmatprep.subr.mxu0 0.0
        %1780 = vmatpush1.msra.mxu0 0.0
        %1781 = vmatprep.subr.mxu0 0.0
        %1782 = vmatpush1.msra.mxu0 0.0
        %1783 = vmatprep.subr.mxu0 0.0
        %1784 = vmatpush1.msra.mxu0 0.0
        %1785 = vmatprep.subr.mxu0 0.0
        %1786 = vmatpush1.msra.mxu0 0.0
        %1787 = vmatprep.subr.mxu0 0.0
        %1788 = vmatpush1.msra.mxu0 0.0
        %1789 = vmatprep.subr.mxu0 0.0
        %1790 = vmatpush1.msra.mxu0 0.0
        %1791 = vmatprep.subr.mxu0 0.0
        %1792 = vmatpush1.msra.mxu0 0.0
        %1793 = vmatprep.subr.mxu0 0.0
        %1794 = vmatpush1.msra.mxu0 0.0
        %1795 = vmatprep.subr.mxu0 0.0
        %1796 = vmatpush1.msra.mxu0 0.0
        %1797 = vmatprep.subr.mxu0 0.0
        %1798 = vmatpush1.msra.mxu0 0.0
        %1799 = vmatprep.subr.mxu0 0.0
        %1800 = vmatpush1.msra.mxu0 0.0
        %1801 = vmatprep.subr.mxu0 0.0
        %1802 = vmatpush1.msra.mxu0 0.0
        %1803 = vmatprep.subr.mxu0 0.0
        %1804 = vmatpush1.msra.mxu0 0.0
        %1805 = vmatprep.subr.mxu0 0.0
        %1806 = vmatpush1.msra.mxu0 0.0
        %1807 = vmatprep.subr.mxu0 0.0
        %1808 = vmatpush1.msra.mxu0 0.0
        %1809 = vmatprep.subr.mxu0 0.0
        %1810 = vmatpush1.msra.mxu0 0.0
        %1811 = vmatprep.subr.mxu0 0.0
        %1812 = vmatpush1.msra.mxu0 0.0
        %1813 = vmatprep.subr.mxu0 0.0
        %1814 = vmatpush1.msra.mxu0 0.0
        %1815 = vmatprep.subr.mxu0 0.0
        %1816 = vmatpush1.msra.mxu0 0.0
        %1817 = vmatprep.subr.mxu0 0.0
        %1818 = vmatpush1.msra.mxu0 0.0
        %1819 = vmatprep.subr.mxu0 0.0
        %1820 = vmatpush1.msra.mxu0 0.0
        %1821 = vmatprep.subr.mxu0 0.0
        %1822 = vmatpush1.msra.mxu0 0.0
        %1823 = vmatprep.subr.mxu0 0.0
        %1824 = vmatpush1.msra.mxu0 0.0
        %1825 = vmatprep.subr.mxu0 0.0
        %1826 = vmatpush1.msra.mxu0 0.0
        %1827 = vmatprep.subr.mxu0 0.0
        %1828 = vmatpush1.msra.mxu0 0.0
        %1829 = vmatprep.subr.mxu0 0.0
        %1830 = vmatpush1.msra.mxu0 0.0
        %1831 = vmatprep.subr.mxu0 0.0
        %1832 = vmatpush1.msra.mxu0 0.0
        %1833 = vmatprep.mubr.f32.mxu0 0.0
        %1834 = vmatmul.mubr.f32.gmra.mrb[0].mxu0 %v1767
        %v1835 = vpop.f32.mrb[0].mxu0
        %v1836 = vadd.f32 0.0, %v1835
        %v1837 = vpop.f32.mrb[0].mxu0
        %1838 = vdwg.mxu0
        %1840 = vrot.lane.b32.xlu0 %v1380, 4
        %v1841 = vpop.permute.xlu0 %1840
        %1844 = vrot.lane.b32.xlu0 %v1456, 8
        %v1845 = vpop.permute.xlu0 %1844
        %1848 = vrot.lane.b32.xlu0 %v1532, 12
        %v1849 = vpop.permute.xlu0 %1848
        %1852 = vrot.lane.b32.xlu0 %v1608, 16
        %v1853 = vpop.permute.xlu0 %1852
        %1856 = vrot.lane.b32.xlu0 %v1684, 20
        %v1857 = vpop.permute.xlu0 %1856
        %1860 = vrot.lane.b32.xlu0 %v1760, 24
        %v1861 = vpop.permute.xlu0 %1860
        %1864 = vrot.lane.b32.xlu0 %v1836, 28
        %v1865 = vpop.permute.xlu0 %1864
        %v1867 = vsel %vm495, %v1304, %v1841
        %v1868 = vsel %vm1118, %v1867, %v1845
        %vm1869 = vcmask 97280
        %v1870 = vsel %vm1869, %v1868, %v1849
        %vm1871 = vcmask 130048
        %v1872 = vsel %vm1871, %v1870, %v1853
        %vm1873 = vcmask 162816
        %v1874 = vsel %vm1873, %v1872, %v1857
        %vm1875 = vcmask 195584
        %v1876 = vsel %vm1875, %v1874, %v1861
        %vm1877 = vcmask 228352
        %v1878 = vsel %vm1877, %v1876, %v1865
        %v1879 = vld [vmem:[#allocation8] sm:$0xff]
        %v1880 = vld [vmem:[#allocation8 + $0x8] sm:$0xff]
        %v1881 = vld [vmem:[#allocation8 + $0x10] sm:$0xff]
        %v1882 = vld [vmem:[#allocation8 + $0x18] sm:$0xff]
        %v1883 = vlaneseq
        %v1884 = vshrl.u32 %v1883, 7
        %v1885 = vsub.s32 2, %v1884
        %v1886 = vrot.slane %v362, %v1885
        %v1888 = vsel %vm363, %v1878, 0
        %1890 = vmatprep.subr.mxu0 0.0
        %1891 = vmatpush1.msra.mxu0 %v1879
        %1892 = vmatprep.subr.mxu0 0.0
        %1893 = vmatpush1.msra.mxu0 %v1880
        %1894 = vmatprep.subr.mxu0 0.0
        %1895 = vmatpush1.msra.mxu0 %v1881
        %1896 = vmatprep.subr.mxu0 0.0
        %1897 = vmatpush1.msra.mxu0 %v1882
        %1898 = vmatprep.subr.mxu0 0.0
        %1899 = vmatpush1.msra.mxu0 0.0
        %1900 = vmatprep.subr.mxu0 0.0
        %1901 = vmatpush1.msra.mxu0 0.0
        %1902 = vmatprep.subr.mxu0 0.0
        %1903 = vmatpush1.msra.mxu0 0.0
        %1904 = vmatprep.subr.mxu0 0.0
        %1905 = vmatpush1.msra.mxu0 0.0
        %1906 = vmatprep.subr.mxu0 0.0
        %1907 = vmatpush1.msra.mxu0 0.0
        %1908 = vmatprep.subr.mxu0 0.0
        %1909 = vmatpush1.msra.mxu0 0.0
        %1910 = vmatprep.subr.mxu0 0.0
        %1911 = vmatpush1.msra.mxu0 0.0
        %1912 = vmatprep.subr.mxu0 0.0
        %1913 = vmatpush1.msra.mxu0 0.0
        %1914 = vmatprep.subr.mxu0 0.0
        %1915 = vmatpush1.msra.mxu0 0.0
        %1916 = vmatprep.subr.mxu0 0.0
        %1917 = vmatpush1.msra.mxu0 0.0
        %1918 = vmatprep.subr.mxu0 0.0
        %1919 = vmatpush1.msra.mxu0 0.0
        %1920 = vmatprep.subr.mxu0 0.0
        %1921 = vmatpush1.msra.mxu0 0.0
        %1922 = vmatprep.subr.mxu0 0.0
        %1923 = vmatpush1.msra.mxu0 0.0
        %1924 = vmatprep.subr.mxu0 0.0
        %1925 = vmatpush1.msra.mxu0 0.0
        %1926 = vmatprep.subr.mxu0 0.0
        %1927 = vmatpush1.msra.mxu0 0.0
        %1928 = vmatprep.subr.mxu0 0.0
        %1929 = vmatpush1.msra.mxu0 0.0
        %1930 = vmatprep.subr.mxu0 0.0
        %1931 = vmatpush1.msra.mxu0 0.0
        %1932 = vmatprep.subr.mxu0 0.0
        %1933 = vmatpush1.msra.mxu0 0.0
        %1934 = vmatprep.subr.mxu0 0.0
        %1935 = vmatpush1.msra.mxu0 0.0
        %1936 = vmatprep.subr.mxu0 0.0
        %1937 = vmatpush1.msra.mxu0 0.0
        %1938 = vmatprep.subr.mxu0 0.0
        %1939 = vmatpush1.msra.mxu0 0.0
        %1940 = vmatprep.subr.mxu0 0.0
        %1941 = vmatpush1.msra.mxu0 0.0
        %1942 = vmatprep.subr.mxu0 0.0
        %1943 = vmatpush1.msra.mxu0 0.0
        %1944 = vmatprep.subr.mxu0 0.0
        %1945 = vmatpush1.msra.mxu0 0.0
        %1946 = vmatprep.subr.mxu0 0.0
        %1947 = vmatpush1.msra.mxu0 0.0
        %1948 = vmatprep.subr.mxu0 0.0
        %1949 = vmatpush1.msra.mxu0 0.0
        %1950 = vmatprep.subr.mxu0 0.0
        %1951 = vmatpush1.msra.mxu0 0.0
        %1952 = vmatprep.subr.mxu0 0.0
        %1953 = vmatpush1.msra.mxu0 0.0
        %1954 = vmatprep.mubr.f32.mxu0 0.0
        %1955 = vmatmul.mubr.f32.gmra.mrb[0].mxu0 %v1888
        %v1956 = vpop.f32.mrb[0].mxu0
        %v1957 = vadd.f32 %v1886, %v1956
        %v1958 = vpop.f32.mrb[0].mxu0
        %1959 = vdwg.mxu0
        %v1960 = vsel %vm1118, %v1223, 0.0
        %v1961 = vsel %vm1118, %v1224, 0.0
        %v1962 = vadd.f32 %v1960, %v1961
        %v1963 = vsel %vm1118, %v1225, 0.0
        %v1964 = vadd.f32 %v1962, %v1963
        %v1965 = vsel %vm1118, %v1226, 0.0
        %v1966 = vadd.f32 %v1964, %v1965
        %v1967 = vsel %vm1118, %v1227, 0.0
        %v1968 = vadd.f32 %v1966, %v1967
        %v1969 = vsel %vm1118, %v1228, 0.0
        %v1970 = vadd.f32 %v1968, %v1969
        %v1971 = vsel %vm1118, %v1229, 0.0
        %v1972 = vadd.f32 %v1970, %v1971
        %v1973 = vsel %vm1118, %v1230, 0.0
        %v1974 = vadd.f32 %v1972, %v1973
        %v1975 = vmul.f32 %v1974, 0.125
        %1976 = vst.msk [vmem:[%s360] sm:$0xff] %vm1118, %v1975
        %v1977 = vadd.f32 %v361, %v1957
        %v1978 = vsel %vm363, %v1977, 0.0
        %1979 = vadd.xlane.f32.xlu0 %v1978
        %v1980 = vpop.xlane.xlu0 %1979
        %v1981 = vmul.f32 %v1980, %v367
        %v1982 = vsub.f32 %v1977, %v1981
        %v1983 = vmul.f32 %v1982, %v1982
        %v1984 = vsel %vm363, %v1983, 0.0
        %1985 = vadd.xlane.f32.xlu0 %v1984
        %v1986 = vpop.xlane.xlu0 %1985
        %v1987 = vmul.f32 %v1986, %v367
        %v1988 = vadd.f32 %v1987, 1e-05
        %v1989 = vrsqrt.pop %v1988
        %v1990 = vmul.f32 %v1982, %v1989
        %v1991 = vlaneseq
        %v1992 = vshrl.u32 %v1991, 7
        %v1993 = vsub.s32 3, %v1992
        %v1994 = vrot.slane %v362, %v1993
        %v1995 = vmul.f32 %v1990, %v1994
        %v1996 = vlaneseq
        %v1997 = vshrl.u32 %v1996, 7
        %v1998 = vsub.s32 4, %v1997
        %v1999 = vrot.slane %v362, %v1998
        %v2000 = vadd.f32 %v1995, %v1999
        %v2001 = vld [vmem:[#allocation10] sm:$0xff]
        %v2002 = vld [vmem:[#allocation10 + $0x8] sm:$0xff]
        %v2003 = vld [vmem:[#allocation10 + $0x10] sm:$0xff]
        %v2004 = vld [vmem:[#allocation10 + $0x18] sm:$0xff]
        %v2005 = vlaneseq
        %v2006 = vshrl.u32 %v2005, 7
        %v2007 = vsub.s32 5, %v2006
        %v2008 = vrot.slane %v362, %v2007
        %v2010 = vsel %vm363, %v2000, 0
        %2012 = vmatprep.subr.mxu0 0.0
        %2013 = vmatpush1.msra.mxu0 %v2001
        %2014 = vmatprep.subr.mxu0 0.0
        %2015 = vmatpush1.msra.mxu0 %v2002
        %2016 = vmatprep.subr.mxu0 0.0
        %2017 = vmatpush1.msra.mxu0 %v2003
        %2018 = vmatprep.subr.mxu0 0.0
        %2019 = vmatpush1.msra.mxu0 %v2004
        %2020 = vmatprep.subr.mxu0 0.0
        %2021 = vmatpush1.msra.mxu0 0.0
        %2022 = vmatprep.subr.mxu0 0.0
        %2023 = vmatpush1.msra.mxu0 0.0
        %2024 = vmatprep.subr.mxu0 0.0
        %2025 = vmatpush1.msra.mxu0 0.0
        %2026 = vmatprep.subr.mxu0 0.0
        %2027 = vmatpush1.msra.mxu0 0.0
        %2028 = vmatprep.subr.mxu0 0.0
        %2029 = vmatpush1.msra.mxu0 0.0
        %2030 = vmatprep.subr.mxu0 0.0
        %2031 = vmatpush1.msra.mxu0 0.0
        %2032 = vmatprep.subr.mxu0 0.0
        %2033 = vmatpush1.msra.mxu0 0.0
        %2034 = vmatprep.subr.mxu0 0.0
        %2035 = vmatpush1.msra.mxu0 0.0
        %2036 = vmatprep.subr.mxu0 0.0
        %2037 = vmatpush1.msra.mxu0 0.0
        %2038 = vmatprep.subr.mxu0 0.0
        %2039 = vmatpush1.msra.mxu0 0.0
        %2040 = vmatprep.subr.mxu0 0.0
        %2041 = vmatpush1.msra.mxu0 0.0
        %2042 = vmatprep.subr.mxu0 0.0
        %2043 = vmatpush1.msra.mxu0 0.0
        %2044 = vmatprep.subr.mxu0 0.0
        %2045 = vmatpush1.msra.mxu0 0.0
        %2046 = vmatprep.subr.mxu0 0.0
        %2047 = vmatpush1.msra.mxu0 0.0
        %2048 = vmatprep.subr.mxu0 0.0
        %2049 = vmatpush1.msra.mxu0 0.0
        %2050 = vmatprep.subr.mxu0 0.0
        %2051 = vmatpush1.msra.mxu0 0.0
        %2052 = vmatprep.subr.mxu0 0.0
        %2053 = vmatpush1.msra.mxu0 0.0
        %2054 = vmatprep.subr.mxu0 0.0
        %2055 = vmatpush1.msra.mxu0 0.0
        %2056 = vmatprep.subr.mxu0 0.0
        %2057 = vmatpush1.msra.mxu0 0.0
        %2058 = vmatprep.subr.mxu0 0.0
        %2059 = vmatpush1.msra.mxu0 0.0
        %2060 = vmatprep.subr.mxu0 0.0
        %2061 = vmatpush1.msra.mxu0 0.0
        %2062 = vmatprep.subr.mxu0 0.0
        %2063 = vmatpush1.msra.mxu0 0.0
        %2064 = vmatprep.subr.mxu0 0.0
        %2065 = vmatpush1.msra.mxu0 0.0
        %2066 = vmatprep.subr.mxu0 0.0
        %2067 = vmatpush1.msra.mxu0 0.0
        %2068 = vmatprep.subr.mxu0 0.0
        %2069 = vmatpush1.msra.mxu0 0.0
        %2070 = vmatprep.subr.mxu0 0.0
        %2071 = vmatpush1.msra.mxu0 0.0
        %2072 = vmatprep.subr.mxu0 0.0
        %2073 = vmatpush1.msra.mxu0 0.0
        %2074 = vmatprep.subr.mxu0 0.0
        %2075 = vmatpush1.msra.mxu0 0.0
        %2076 = vmatprep.mubr.f32.mxu0 0.0
        %2077 = vmatmul.mubr.f32.gmra.mrb[0].mxu0 %v2010
        %v2078 = vpop.f32.mrb[0].mxu0
        %v2079 = vadd.f32 %v2008, %v2078
        %v2080 = vpop.f32.mrb[0].mxu0
        %2081 = vdwg.mxu0
        %vm2082 = vcmp.ge.f32.partialorder %v2079, 0.0
        %v2083 = vmul.f32 %v2079, 0.01
        %v2084 = vsel %vm2082, %v2079, %v2083
        %s2085 = scalar_lea.vmem [#allocation10], 32
        %v2086 = vld [vmem:[%s2085] sm:$0xff]
        %v2087 = vld [vmem:[%s2085 + $0x8] sm:$0xff]
        %v2088 = vld [vmem:[%s2085 + $0x10] sm:$0xff]
        %v2089 = vld [vmem:[%s2085 + $0x18] sm:$0xff]
        %v2090 = vlaneseq
        %v2091 = vshrl.u32 %v2090, 7
        %v2092 = vsub.s32 6, %v2091
        %v2093 = vrot.slane %v362, %v2092
        %v2095 = vsel %vm363, %v2084, 0
        %2097 = vmatprep.subr.mxu0 0.0
        %2098 = vmatpush1.msra.mxu0 %v2086
        %2099 = vmatprep.subr.mxu0 0.0
        %2100 = vmatpush1.msra.mxu0 %v2087
        %2101 = vmatprep.subr.mxu0 0.0
        %2102 = vmatpush1.msra.mxu0 %v2088
        %2103 = vmatprep.subr.mxu0 0.0
        %2104 = vmatpush1.msra.mxu0 %v2089
        %2105 = vmatprep.subr.mxu0 0.0
        %2106 = vmatpush1.msra.mxu0 0.0
        %2107 = vmatprep.subr.mxu0 0.0
        %2108 = vmatpush1.msra.mxu0 0.0
        %2109 = vmatprep.subr.mxu0 0.0
        %2110 = vmatpush1.msra.mxu0 0.0
        %2111 = vmatprep.subr.mxu0 0.0
        %2112 = vmatpush1.msra.mxu0 0.0
        %2113 = vmatprep.subr.mxu0 0.0
        %2114 = vmatpush1.msra.mxu0 0.0
        %2115 = vmatprep.subr.mxu0 0.0
        %2116 = vmatpush1.msra.mxu0 0.0
        %2117 = vmatprep.subr.mxu0 0.0
        %2118 = vmatpush1.msra.mxu0 0.0
        %2119 = vmatprep.subr.mxu0 0.0
        %2120 = vmatpush1.msra.mxu0 0.0
        %2121 = vmatprep.subr.mxu0 0.0
        %2122 = vmatpush1.msra.mxu0 0.0
        %2123 = vmatprep.subr.mxu0 0.0
        %2124 = vmatpush1.msra.mxu0 0.0
        %2125 = vmatprep.subr.mxu0 0.0
        %2126 = vmatpush1.msra.mxu0 0.0
        %2127 = vmatprep.subr.mxu0 0.0
        %2128 = vmatpush1.msra.mxu0 0.0
        %2129 = vmatprep.subr.mxu0 0.0
        %2130 = vmatpush1.msra.mxu0 0.0
        %2131 = vmatprep.subr.mxu0 0.0
        %2132 = vmatpush1.msra.mxu0 0.0
        %2133 = vmatprep.subr.mxu0 0.0
        %2134 = vmatpush1.msra.mxu0 0.0
        %2135 = vmatprep.subr.mxu0 0.0
        %2136 = vmatpush1.msra.mxu0 0.0
        %2137 = vmatprep.subr.mxu0 0.0
        %2138 = vmatpush1.msra.mxu0 0.0
        %2139 = vmatprep.subr.mxu0 0.0
        %2140 = vmatpush1.msra.mxu0 0.0
        %2141 = vmatprep.subr.mxu0 0.0
        %2142 = vmatpush1.msra.mxu0 0.0
        %2143 = vmatprep.subr.mxu0 0.0
        %2144 = vmatpush1.msra.mxu0 0.0
        %2145 = vmatprep.subr.mxu0 0.0
        %2146 = vmatpush1.msra.mxu0 0.0
        %2147 = vmatprep.subr.mxu0 0.0
        %2148 = vmatpush1.msra.mxu0 0.0
        %2149 = vmatprep.subr.mxu0 0.0
        %2150 = vmatpush1.msra.mxu0 0.0
        %2151 = vmatprep.subr.mxu0 0.0
        %2152 = vmatpush1.msra.mxu0 0.0
        %2153 = vmatprep.subr.mxu0 0.0
        %2154 = vmatpush1.msra.mxu0 0.0
        %2155 = vmatprep.subr.mxu0 0.0
        %2156 = vmatpush1.msra.mxu0 0.0
        %2157 = vmatprep.subr.mxu0 0.0
        %2158 = vmatpush1.msra.mxu0 0.0
        %2159 = vmatprep.subr.mxu0 0.0
        %2160 = vmatpush1.msra.mxu0 0.0
        %2161 = vmatprep.mubr.f32.mxu0 0.0
        %2162 = vmatmul.mubr.f32.gmra.mrb[0].mxu0 %v2095
        %v2163 = vpop.f32.mrb[0].mxu0
        %v2164 = vadd.f32 %v2093, %v2163
        %v2165 = vpop.f32.mrb[0].mxu0
        %2166 = vdwg.mxu0
        %v2167 = vadd.f32 %v2164, %v1977
        %2168 = vst.msk [vmem:[%s353] sm:$0xff] %vm363, %v2167
        %s2169 = sand.u32 %s169, 1
        %s2170 = scalar_lea.sflag [#allocation4], %s2169
        %s2171 = sand.u32 %s169, 1
        %s2172 = smul.addr %s2171, 8
        %s2173 = scalar_lea.vmem [#allocation11], %s2172
        %s2174 = sand.u32 %s195, 1
        %s2175 = scalar_lea.sflag [#allocation13], %s2174
        %s2176 = sand.u32 %s195, 1
        %s2177 = smul.addr %s2176, 8
        %s2178 = scalar_lea.vmem [#allocation12], %s2177
        // Predicated region
        $region65: #{tpu_custom_call.1} parent=43 // pred_check
          %p2179 = pneg %p179
        $region66: #{tpu_custom_call.1} parent=43 // pred_check_branch
          %2181 = sbr.rel (%p2179) target = $region68
        $region67: #{tpu_custom_call.1} parent=43 // pred_region
          %s2183 = ssub.s32 128, 128
          %2184 = vsyncadd %s2170, %s2183
          %s2185 = smul.addr %s30, 128
          %s2186 = scalar_lea.hbm %s6, %s2185
          %s2188 = sshll.u32 %s2173, 4
          %s2189 = int_to_ptr.vmem [resolvable:$true] %s2188
          %2191 = dma.vmem_to_hbm [thread:$0]  %s2189, 128, %s2186, %s2170
        $region68: #{tpu_custom_call.1} parent=43 // pred_fallthru
          _
        // Predicated region
        $region69: #{tpu_custom_call.1} parent=43 // pred_check
          %p2192 = pneg %p205
        $region70: #{tpu_custom_call.1} parent=43 // pred_check_branch
          %2194 = sbr.rel (%p2192) target = $region72
        $region71: #{tpu_custom_call.1} parent=43 // pred_region
          %s2196 = ssub.s32 128, 128
          %2197 = vsyncadd %s2175, %s2196
          %s2198 = smul.addr %s30, 128
          %s2199 = scalar_lea.hbm %s7, %s2198
          %s2201 = sshll.u32 %s2178, 4
          %s2202 = int_to_ptr.vmem [resolvable:$true] %s2201
          %2204 = dma.vmem_to_hbm [thread:$0]  %s2202, 128, %s2199, %s2175
        $region72: #{tpu_custom_call.1} parent=43 // pred_fallthru
          _
      $region44: #{tpu_custom_call.1} parent=5 // pred_fallthru
        _
      %p2205 = scmp.le.s32.totalorder 2, %s25
      // Predicated region
      $region73: #{tpu_custom_call.1} parent=5 // pred_check
        %p2206 = pneg %p2205
      $region74: #{tpu_custom_call.1} parent=5 // pred_check_branch
        %2208 = sbr.rel (%p2206) target = $region76
      $region75: #{tpu_custom_call.1} parent=5 // pred_region
        %s2209 = ssub.s32 %s25, 2
        // Predicated region
        $region77: #{tpu_custom_call.1} parent=75 // pred_check
          %p2210 = pneg %p185
        $region78: #{tpu_custom_call.1} parent=75 // pred_check_branch
          %2212 = sbr.rel (%p2210) target = $region80
        $region79: #{tpu_custom_call.1} parent=75 // pred_region
          %s2213 = sand.u32 %s170, 1
          %s2214 = scalar_lea.sflag [#allocation4], %s2213
          %s2215 = sand.u32 %s170, 1
          %s2216 = smul.addr %s2215, 8
          %s2217 = scalar_lea.vmem [#allocation11], %s2216
          %2218 = dma.done %s2214, 128
        $region80: #{tpu_custom_call.1} parent=75 // pred_fallthru
          _
        // Predicated region
        $region81: #{tpu_custom_call.1} parent=75 // pred_check
          %p2219 = pneg %p211
        $region82: #{tpu_custom_call.1} parent=75 // pred_check_branch
          %2221 = sbr.rel (%p2219) target = $region84
        $region83: #{tpu_custom_call.1} parent=75 // pred_region
          %s2222 = sand.u32 %s196, 1
          %s2223 = scalar_lea.sflag [#allocation13], %s2222
          %s2224 = sand.u32 %s196, 1
          %s2225 = smul.addr %s2224, 8
          %s2226 = scalar_lea.vmem [#allocation12], %s2225
          %2227 = dma.done %s2223, 128
        $region84: #{tpu_custom_call.1} parent=75 // pred_fallthru
          _
      $region76: #{tpu_custom_call.1} parent=5 // pred_fallthru
        _
    $region6: #{tpu_custom_call.1} parent=1 // loop_footer
      %s29 = sadd.s32 1, %s25
    $region7: #{tpu_custom_call.1} parent=1 // loop_footer_branch
      %24 = sbr.rel target = $region3
    $region8: #{tpu_custom_call.1} parent=1 // loop_exit
      _
    %2228 = vsyncpa [#allocation3], 1
    %s2229 = scalar_lea.sflag [#allocation3], 1
    %2230 = vsyncpa %s2229, 1
    %2231 = vsyncpa [#allocation6], 1
    %2232 = vsyncpa [#allocation9], 1
    %2233 = vsyncpa [#allocation4], 1
    %s2234 = scalar_lea.sflag [#allocation4], 1
    %2235 = vsyncpa %s2234, 1
    %2236 = vsyncpa [#allocation13], 1
    %s2237 = scalar_lea.sflag [#allocation13], 1
    %2238 = vsyncpa %s2237, 1

</llo_original>
